<compile_context>
chip_gen: v6e
topology: v6e:2x2x1
jax: 0.10.0
libtpu: 0.0.40
codegen_flags: <defaults>
</compile_context>

<pallas_src>
import numpy as np

import jax
import jax.numpy as jnp
from jax.experimental import pallas as pl
from jax.experimental.pallas import tpu as pltpu

EPS = 1e-5      # nn.BatchNorm2d default eps
LANE = 128      # TPU lane width


def _round_up(x, k):
    return (x + k - 1) // k * k


# ---------------------------------------------------------------------------
# trace-time helpers (tap plans, masks, layout conversion)
# ---------------------------------------------------------------------------
def _shift_lanes(x, s):
    """result[..., p] = x[..., (p + s) mod L].  Any lane whose shifted read
    would cross an image boundary (or the rotate wrap) is killed by the tap
    mask, so a plain rotate (slice + concat) is sufficient."""
    m = x.shape[-1]
    s = s % m
    if s == 0:
        return x
    return jnp.concatenate([x[:, s:], x[:, :s]], axis=-1)


def _plan_stride1(wo):
    """3x3 / stride-1 / pad-1 conv: 9 taps -> (source idx, lane shift)."""
    plan, offs = [], []
    for kh in range(3):
        for kw in range(3):
            dh, dw = kh - 1, kw - 1
            plan.append((0, dh * wo + dw))
            offs.append((dh, dw))
    return plan, offs


# kh -> (phase along H, row offset inside the phase array); same for kw.
_PHASE2 = {0: (1, -1), 1: (0, 0), 2: (1, 0)}


def _plan_stride2(wo):
    """3x3 / stride-2 / pad-1 conv over the 4 polyphase components of x."""
    plan, offs = [], []
    for kh in range(3):
        for kw in range(3):
            ph, ro = _PHASE2[kh]
            pw, co = _PHASE2[kw]
            plan.append((ph * 2 + pw, ro * wo + co))
            offs.append((ro, co))
    return plan, offs


def _tap_masks(ho, wo, m_pad, offs, g):
    """(9, g*m_pad) 0/1 masks: emulate zero padding, kill the lane-pad tail,
    and prevent shifted reads from leaking across packed-image boundaries."""
    p = np.arange(m_pad)
    hh, ww = p // wo, p % wo
    ms = []
    for ro, co in offs:
        ok = ((hh < ho) & (hh + ro >= 0) & (hh + ro < ho)
              & (ww + co >= 0) & (ww + co < wo))
        ms.append(ok.astype(np.float32))
    m = np.tile(np.stack(ms), (1, g))                # same pattern per image
    return jnp.asarray(m).astype(jnp.bfloat16)


def _to_packed(x_nhwc, c_pad, m_pad, g, dtype):
    """NHWC -> (N//g, C_pad, g*M_pad): channels on sublanes, g images packed
    side-by-side along lanes (each image gets its own M_pad lane segment)."""
    n, hh, ww, c = x_nhwc.shape
    x = jnp.transpose(x_nhwc, (0, 3, 1, 2)).reshape(n, c, hh * ww)
    x = jnp.pad(x, ((0, 0), (0, c_pad - c), (0, m_pad - hh * ww)))
    x = x.reshape(n // g, g, c_pad, m_pad)
    x = jnp.transpose(x, (0, 2, 1, 3)).reshape(n // g, c_pad, g * m_pad)
    return x.astype(dtype)


def _from_packed(x_cm, n, g, m_pad, m, ho, wo):
    """(N//g, C, g*M_pad) -> NHWC."""
    nb, c, _ = x_cm.shape
    x = x_cm.reshape(nb, c, g, m_pad).transpose(0, 2, 1, 3).reshape(n, c, m_pad)
    return x[:, :, :m].reshape(n, c, ho, wo).transpose(0, 2, 3, 1)


def _prep_w_taps(w_hwio, cin_pad):
    """(3,3,Cin,Cout) -> (9, Cout, Cin_pad) bf16; tap order matches the plans."""
    kh, kw, cin, cout = w_hwio.shape
    wt = jnp.transpose(w_hwio, (0, 1, 3, 2)).reshape(kh * kw, cout, cin)
    wt = jnp.pad(wt, ((0, 0), (0, 0), (0, cin_pad - cin)))
    return wt.astype(jnp.bfloat16)


def _bn_affine(stats, gamma, beta, count):
    """Fold batch stats (sum / sum_sq partials) + gamma/beta into y*a + c."""
    tot = jnp.sum(stats.astype(jnp.float32), axis=0)        # (C, 2)
    mean = tot[:, 0] / count
    var = tot[:, 1] / count - mean * mean                    # biased (training BN)
    inv = jax.lax.rsqrt(var + EPS)
    a = gamma * inv
    c = beta - mean * a
    return (a.reshape(-1, 1).astype(jnp.float32),
            c.reshape(-1, 1).astype(jnp.float32))


def _pick_group(n, n_src, cin_pad, planes, m_pad,
                budget_bytes=6 * 1024 * 1024):
    """Largest divisor of N whose per-block VMEM footprint (double-buffered
    ins/outs + in-kernel f32 accumulator + transient shifted copies) stays
    within a conservative budget."""
    per_img = m_pad * (
        4 * n_src * cin_pad        # bf16 src, double-buffered
        + 8 * planes               # f32 conv output, double-buffered
        + 8 * planes               # f32 y1 input of the conv2 pass, dbl-buffered
        + 4 * planes               # f32 accumulator
        + 4 * max(cin_pad, planes)  # transient shifted/masked bf16 copies
        + 8 * planes               # finalize pass residual + output
    )
    g = 1
    for cand in range(1, n + 1):
        if n % cand == 0 and cand * per_img <= budget_bytes:
            g = cand
    return g


def _compiler_params():
    # 32 MiB scoped VMEM is safe on v5e/v6e/v7x; _pick_group keeps per-block
    # footprints well below it.
    return pltpu.CompilerParams(
        dimension_semantics=("parallel",),     # megacore-shard the block axis
        vmem_limit_bytes=32 * 1024 * 1024,
    )


# ---------------------------------------------------------------------------
# Pallas kernels
# ---------------------------------------------------------------------------
def _make_conv_kernel(plan, n_src):
    """conv3x3 = 9 shifted (Cout,Cin)@(Cin,M) MXU matmuls + BN partial sums."""
    def kernel(src_ref, w_ref, mask_ref, y_ref, st_ref):
        cout, m_l = y_ref.shape[-2], y_ref.shape[-1]
        srcs = [src_ref[0, i] for i in range(n_src)]         # bf16 (Cin_pad, M)
        acc = jnp.zeros((cout, m_l), jnp.float32)
        for t, (si, sh) in enumerate(plan):
            xs = _shift_lanes(srcs[si], sh) * mask_ref[t:t + 1, :]
            acc = acc + jnp.dot(w_ref[t], xs, preferred_element_type=jnp.float32)
        y_ref[0] = acc
        # per-block BN partials (cross-lane reduce is XLU work, hidden under MXU)
        st_ref[0, :, 0:1] = jnp.sum(acc, axis=-1, keepdims=True)
        st_ref[0, :, 1:2] = jnp.sum(acc * acc, axis=-1, keepdims=True)
    return kernel


def _make_bn_relu_conv_kernel(plan):
    """BN1-apply + ReLU fused in front of conv2 (out1 never leaves VMEM)."""
    def kernel(y1_ref, a_ref, c_ref, w_ref, mask_ref, y2_ref, st_ref):
        cout, m_l = y2_ref.shape[-2], y2_ref.shape[-1]
        out1 = jnp.maximum(y1_ref[0] * a_ref[...] + c_ref[...], 0.0)   # f32 math
        src = out1.astype(jnp.bfloat16)
        acc = jnp.zeros((cout, m_l), jnp.float32)
        for t, (_, sh) in enumerate(plan):
            xs = _shift_lanes(src, sh) * mask_ref[t:t + 1, :]
            acc = acc + jnp.dot(w_ref[t], xs, preferred_element_type=jnp.float32)
        y2_ref[0] = acc
        st_ref[0, :, 0:1] = jnp.sum(acc, axis=-1, keepdims=True)
        st_ref[0, :, 1:2] = jnp.sum(acc * acc, axis=-1, keepdims=True)
    return kernel


def _finalize_kernel(y2_ref, a_ref, c_ref, sc_ref, o_ref):
    """BN2-apply + residual add + ReLU (elementwise, lane-dense)."""
    o_ref[0] = jnp.maximum(y2_ref[0] * a_ref[...] + c_ref[...] + sc_ref[0], 0.0)


# ---------------------------------------------------------------------------
# pallas_call wrappers
# ---------------------------------------------------------------------------
def _conv_pass(src, w_taps, masks, plan, cout):
    nb, n_src, cin_pad, m_l = src.shape
    flops = 2 * 9 * nb * cout * cin_pad * m_l
    bytes_accessed = (src.size * 2 + w_taps.size * 2 + masks.size * 2
                      + nb * cout * (m_l + 2) * 4)
    return pl.pallas_call(
        _make_conv_kernel(plan, n_src),
        grid=(nb,),
        in_specs=[
            pl.BlockSpec((1, n_src, cin_pad, m_l), lambda i: (i, 0, 0, 0)),
            pl.BlockSpec(w_taps.shape, lambda i: (0, 0, 0)),   # weights resident
            pl.BlockSpec(masks.shape, lambda i: (0, 0)),       # masks resident
        ],
        out_specs=(
            pl.BlockSpec((1, cout, m_l), lambda i: (i, 0, 0)),
            pl.BlockSpec((1, cout, 2), lambda i: (i, 0, 0)),
        ),
        out_shape=(
            jax.ShapeDtypeStruct((nb, cout, m_l), jnp.float32),  # raw conv (pre-BN)
            jax.ShapeDtypeStruct((nb, cout, 2), jnp.float32),    # sum / sum_sq
        ),
        compiler_params=_compiler_params(),
        cost_estimate=pl.CostEstimate(flops=flops, transcendentals=0,
                                      bytes_accessed=bytes_accessed),
    )(src, w_taps, masks)


def _bn_relu_conv_pass(y1, a1, c1, w_taps, masks, plan, cout):
    nb, cin, m_l = y1.shape
    flops = 2 * 9 * nb * cout * cin * m_l
    bytes_accessed = (y1.size * 4 + w_taps.size * 2 + masks.size * 2
                      + nb * cout * (m_l + 2) * 4)
    return pl.pallas_call(
        _make_bn_relu_conv_kernel(plan),
        grid=(nb,),
        in_specs=[
            pl.BlockSpec((1, cin, m_l), lambda i: (i, 0, 0)),
            pl.BlockSpec(a1.shape, lambda i: (0, 0)),
            pl.BlockSpec(c1.shape, lambda i: (0, 0)),
            pl.BlockSpec(w_taps.shape, lambda i: (0, 0, 0)),
            pl.BlockSpec(masks.shape, lambda i: (0, 0)),
        ],
        out_specs=(
            pl.BlockSpec((1, cout, m_l), lambda i: (i, 0, 0)),
            pl.BlockSpec((1, cout, 2), lambda i: (i, 0, 0)),
        ),
        out_shape=(
            jax.ShapeDtypeStruct((nb, cout, m_l), jnp.float32),
            jax.ShapeDtypeStruct((nb, cout, 2), jnp.float32),
        ),
        compiler_params=_compiler_params(),
        cost_estimate=pl.CostEstimate(flops=flops, transcendentals=0,
                                      bytes_accessed=bytes_accessed),
    )(y1, a1, c1, w_taps, masks)


def _finalize_pass(y2, a2, c2, sc):
    nb, cout, m_l = y2.shape
    return pl.pallas_call(
        _finalize_kernel,
        grid=(nb,),
        in_specs=[
            pl.BlockSpec((1, cout, m_l), lambda i: (i, 0, 0)),
            pl.BlockSpec(a2.shape, lambda i: (0, 0)),
            pl.BlockSpec(c2.shape, lambda i: (0, 0)),
            pl.BlockSpec((1, cout, m_l), lambda i: (i, 0, 0)),
        ],
        out_specs=pl.BlockSpec((1, cout, m_l), lambda i: (i, 0, 0)),
        out_shape=jax.ShapeDtypeStruct((nb, cout, m_l), jnp.float32),
        compiler_params=_compiler_params(),
    )(y2, a2, c2, sc)


# ---------------------------------------------------------------------------
# BasicBlock forward
# ---------------------------------------------------------------------------
def basic_block_forward(x_nhwc, params, stride):
    n, h, w_sp, cin = x_nhwc.shape
    w1, g1, b1 = params["w1"], params["g1"], params["b1"]   # w1: (3,3,Cin,planes)
    w2, g2, b2 = params["w2"], params["g2"], params["b2"]   # w2: (3,3,planes,planes)
    planes = w1.shape[-1]
    assert stride in (1, 2) and h % stride == 0 and w_sp % stride == 0

    ho, wo = h // stride, w_sp // stride
    m = ho * wo
    m_pad = _round_up(m, LANE)           # lane-dense, unmasked stores
    cin_pad = _round_up(cin, 8)          # sublane-aligned contraction dim
    count = n * m                        # true #positions for the batch stats
    n_src = 1 if stride == 1 else 4
    g = _pick_group(n, n_src, cin_pad, planes, m_pad)   # images per block

    # ---- conv1 (+ per-block BN1 partial stats) -------------------------------
    if stride == 1:
        plan1, offs1 = _plan_stride1(wo)
        src1 = _to_packed(x_nhwc, cin_pad, m_pad, g, jnp.bfloat16)[:, None]
    else:
        plan1, offs1 = _plan_stride2(wo)
        phases = [_to_packed(x_nhwc[:, ph::2, pw::2, :], cin_pad, m_pad, g,
                             jnp.bfloat16)
                  for ph in (0, 1) for pw in (0, 1)]
        src1 = jnp.stack(phases, axis=1)        # (N//g, 4, Cin_pad, g*M_pad) == |x|
    masks1 = _tap_masks(ho, wo, m_pad, offs1, g)
    y1, st1 = _conv_pass(src1, _prep_w_taps(w1, cin_pad), masks1, plan1, planes)
    a1, c1 = _bn_affine(st1, g1, b1, count)     # exact batch-wide BN1

    # ---- BN1+ReLU fused into conv2 (+ per-block BN2 partial stats) -----------
    plan2, offs2 = _plan_stride1(wo)
    masks2 = _tap_masks(ho, wo, m_pad, offs2, g)
    y2, st2 = _bn_relu_conv_pass(y1, a1, c1, _prep_w_taps(w2, planes),
                                 masks2, plan2, planes)
    a2, c2 = _bn_affine(st2, g2, b2, count)     # exact batch-wide BN2

    # ---- shortcut (option 'A') ------------------------------------------------
    if stride != 1 or cin != planes:
        padc = planes // 4
        # Matches the CIFAR ResNet assumption planes == cin + 2*(planes//4).
        assert cin + 2 * padc == planes, "option-A shortcut channel mismatch"
        # TODO(synk): PyTorch's lambda hardcodes ::2; this uses ::stride, which
        # is identical for the stride=2 blocks the option-A path is built for.
        sc_nhwc = jnp.pad(x_nhwc[:, ::stride, ::stride, :],
                          ((0, 0), (0, 0), (0, 0), (padc, padc)))
    else:
        sc_nhwc = x_nhwc
    sc = _to_packed(sc_nhwc, planes, m_pad, g, jnp.float32)

    # ---- BN2 apply + residual add + ReLU --------------------------------------
    out_cm = _finalize_pass(y2, a2, c2, sc)
    return _from_packed(out_cm, n, g, m_pad, m, ho, wo)


# ---------------------------------------------------------------------------
# Pure-JAX reference (training-mode BatchNorm).  conv_dtype lets us mirror the
# bf16 MXU operands for a tight check, plus a pure-f32 sanity comparison.
# ---------------------------------------------------------------------------
def _reference_forward(x_nhwc, params, stride, conv_dtype):
    def conv(x, w, s):
        return jax.lax.conv_general_dilated(
            x.astype(conv_dtype), w.astype(conv_dtype), (s, s), ((1, 1), (1, 1)),
            dimension_numbers=("NHWC", "HWIO", "NHWC"),
            preferred_element_type=jnp.float32)

    def bn(y, g, b):
        mean = jnp.mean(y, axis=(0, 1, 2), keepdims=True)
        var = jnp.mean(jnp.square(y - mean), axis=(0, 1, 2), keepdims=True)
        return (y - mean) * jax.lax.rsqrt(var + EPS) * g + b

    w1, g1, b1 = params["w1"], params["g1"], params["b1"]
    w2, g2, b2 = params["w2"], params["g2"], params["b2"]
    planes, cin = w1.shape[-1], x_nhwc.shape[-1]

    out = jax.nn.relu(bn(conv(x_nhwc, w1, stride), g1, b1))
    out = bn(conv(out, w2, 1), g2, b2)
    if stride != 1 or cin != planes:
        padc = planes // 4
        sc = jnp.pad(x_nhwc[:, ::stride, ::stride, :],
                     ((0, 0), (0, 0), (0, 0), (padc, padc)))
    else:
        sc = x_nhwc
    return jax.nn.relu(out + sc)


# ---------------------------------------------------------------------------
if __name__ == "__main__":
    # BasicBlock(in_planes=4, planes=8, stride=2, option='A')
    N, IN_PLANES, PLANES, H, W, STRIDE = 2, 4, 8, 16, 16, 2

    key = jax.random.PRNGKey(0)
    kx, kw1, kw2 = jax.random.split(key, 3)

    # Input in PyTorch's NCHW convention, transposed once to NHWC.
    x_nchw = jax.random.normal(kx, (N, IN_PLANES, H, W), dtype=jnp.float32)
    x_nhwc = jnp.transpose(x_nchw, (0, 2, 3, 1))

    params = {
        "w1": 0.1 * jax.random.normal(kw1, (3, 3, IN_PLANES, PLANES), jnp.float32),
        "g1": 1.0 + 0.1 * jnp.arange(PLANES, dtype=jnp.float32),
        "b1": 0.01 * jnp.arange(PLANES, dtype=jnp.float32),
        "w2": 0.1 * jax.random.normal(kw2, (3, 3, PLANES, PLANES), jnp.float32),
        "g2": 1.0 - 0.05 * jnp.arange(PLANES, dtype=jnp.float32),
        "b2": -0.02 * jnp.arange(PLANES, dtype=jnp.float32),
    }

    fwd = jax.jit(basic_block_forward, static_argnums=2)
    out = jax.block_until_ready(fwd(x_nhwc, params, STRIDE))

    ref_bf16 = jax.block_until_ready(
        _reference_forward(x_nhwc, params, STRIDE, jnp.bfloat16))
    ref_f32 = jax.block_until_ready(
        _reference_forward(x_nhwc, params, STRIDE, jnp.float32))

    assert out.shape == (N, H // STRIDE, W // STRIDE, PLANES), out.shape
    # Tight check against a reference using the same bf16 MXU operands.
    assert jnp.allclose(out, ref_bf16, atol=1e-3, rtol=1e-3), float(
        jnp.max(jnp.abs(out - ref_bf16)))
    # Loose sanity check against the pure-f32 reference (bf16 quantization).
    assert jnp.allclose(out, ref_f32, atol=5e-2, rtol=5e-2), float(
        jnp.max(jnp.abs(out - ref_f32)))

    print("KERNEL_OK")
</pallas_src>

<mosaic_0001>
module attributes {stable_mosaic.version = 11 : i64} {
  func.func @kernel(%arg0: i32, %arg1: memref<1x8x256xf32, #tpu.memory_space<vmem>>, %arg2: memref<8x1xf32, #tpu.memory_space<vmem>>, %arg3: memref<8x1xf32, #tpu.memory_space<vmem>>, %arg4: memref<9x8x8xbf16, #tpu.memory_space<vmem>>, %arg5: memref<9x256xbf16, #tpu.memory_space<vmem>>, %arg6: memref<1x8x256xf32, #tpu.memory_space<vmem>>, %arg7: memref<1x8x2xf32, #tpu.memory_space<vmem>>) attributes {dimension_semantics = [#tpu.dimension_semantics<parallel>], iteration_bounds = array<i64: 1>, scalar_prefetch = 0 : i64, scratch_operands = 0 : i64, tpu.core_type = #tpu.core_type<tc>, window_params = [{transform_indices = @transform_0, window_bounds = array<i64: 1, 8, 256>}, {pipeline_mode = #tpu.pipeline_mode<synchronous>, transform_indices = @transform_1, window_bounds = array<i64: 8, 1>}, {pipeline_mode = #tpu.pipeline_mode<synchronous>, transform_indices = @transform_2, window_bounds = array<i64: 8, 1>}, {pipeline_mode = #tpu.pipeline_mode<synchronous>, transform_indices = @transform_3, window_bounds = array<i64: 9, 8, 8>}, {pipeline_mode = #tpu.pipeline_mode<synchronous>, transform_indices = @transform_4, window_bounds = array<i64: 9, 256>}, {transform_indices = @transform_5, window_bounds = array<i64: 1, 8, 256>}, {transform_indices = @transform_6, window_bounds = array<i64: 1, 8, 2>}]} {
    %c0 = arith.constant 0 : index
    %c0_0 = arith.constant 0 : index
    %c0_1 = arith.constant 0 : index
    %0 = vector.load %arg1[%c0, %c0_0, %c0_1] : memref<1x8x256xf32, #tpu.memory_space<vmem>>, vector<1x8x256xf32>
    %1 = vector.shape_cast %0 : vector<1x8x256xf32> to vector<8x256xf32>
    %c0_2 = arith.constant 0 : index
    %c0_3 = arith.constant 0 : index
    %2 = vector.load %arg2[%c0_2, %c0_3] : memref<8x1xf32, #tpu.memory_space<vmem>>, vector<8x1xf32>
    %3 = vector.broadcast %2 : vector<8x1xf32> to vector<8x256xf32>
    %4 = arith.mulf %1, %3 : vector<8x256xf32>
    %c0_4 = arith.constant 0 : index
    %c0_5 = arith.constant 0 : index
    %5 = vector.load %arg3[%c0_4, %c0_5] : memref<8x1xf32, #tpu.memory_space<vmem>>, vector<8x1xf32>
    %6 = vector.broadcast %5 : vector<8x1xf32> to vector<8x256xf32>
    %7 = arith.addf %4, %6 : vector<8x256xf32>
    %cst = arith.constant 0.000000e+00 : f32
    %8 = vector.broadcast %cst : f32 to vector<8x256xf32>
    %9 = arith.maximumf %7, %8 : vector<8x256xf32>
    %10 = arith.truncf %9 : vector<8x256xf32> to vector<8x256xbf16>
    %cst_6 = arith.constant 0.000000e+00 : f32
    %11 = vector.broadcast %cst_6 : f32 to vector<8x256xf32>
    %12 = vector.extract_strided_slice %10 {offsets = [0, 247], sizes = [8, 9], strides = [1, 1]} : vector<8x256xbf16> to vector<8x9xbf16>
    %13 = vector.extract_strided_slice %10 {offsets = [0, 0], sizes = [8, 247], strides = [1, 1]} : vector<8x256xbf16> to vector<8x247xbf16>
    %14 = tpu.concatenate %12, %13 in 1 : vector<8x9xbf16>, vector<8x247xbf16> -> vector<8x256xbf16>
    %c0_7 = arith.constant 0 : index
    %c0_8 = arith.constant 0 : index
    %15 = vector.load %arg5[%c0_7, %c0_8] : memref<9x256xbf16, #tpu.memory_space<vmem>>, vector<1x256xbf16>
    %16 = vector.broadcast %15 : vector<1x256xbf16> to vector<8x256xbf16>
    %17 = arith.mulf %14, %16 : vector<8x256xbf16>
    %c0_9 = arith.constant 0 : index
    %c0_10 = arith.constant 0 : index
    %c0_11 = arith.constant 0 : index
    %18 = vector.load %arg4[%c0_9, %c0_10, %c0_11] : memref<9x8x8xbf16, #tpu.memory_space<vmem>>, vector<1x8x8xbf16>
    %19 = vector.shape_cast %18 : vector<1x8x8xbf16> to vector<8x8xbf16>
    %cst_12 = arith.constant dense<0.000000e+00> : vector<8x256xf32>
    %20 = tpu.matmul %19, %17, %cst_12 {dimension_numbers = #tpu.dot_dimension_numbers<[1], [0], [0], [1], [0, 0, 1, 1], [], []>} : vector<8x8xbf16>, vector<8x256xbf16>, vector<8x256xf32> -> vector<8x256xf32>
    %21 = arith.addf %11, %20 : vector<8x256xf32>
    %22 = vector.extract_strided_slice %10 {offsets = [0, 248], sizes = [8, 8], strides = [1, 1]} : vector<8x256xbf16> to vector<8x8xbf16>
    %23 = vector.extract_strided_slice %10 {offsets = [0, 0], sizes = [8, 248], strides = [1, 1]} : vector<8x256xbf16> to vector<8x248xbf16>
    %24 = tpu.concatenate %22, %23 in 1 : vector<8x8xbf16>, vector<8x248xbf16> -> vector<8x256xbf16>
    %c1 = arith.constant 1 : index
    %c0_13 = arith.constant 0 : index
    %25 = vector.load %arg5[%c1, %c0_13] : memref<9x256xbf16, #tpu.memory_space<vmem>>, vector<1x256xbf16>
    %26 = vector.broadcast %25 : vector<1x256xbf16> to vector<8x256xbf16>
    %27 = arith.mulf %24, %26 : vector<8x256xbf16>
    %c1_14 = arith.constant 1 : index
    %c0_15 = arith.constant 0 : index
    %c0_16 = arith.constant 0 : index
    %28 = vector.load %arg4[%c1_14, %c0_15, %c0_16] : memref<9x8x8xbf16, #tpu.memory_space<vmem>>, vector<1x8x8xbf16>
    %29 = vector.shape_cast %28 : vector<1x8x8xbf16> to vector<8x8xbf16>
    %cst_17 = arith.constant dense<0.000000e+00> : vector<8x256xf32>
    %30 = tpu.matmul %29, %27, %cst_17 {dimension_numbers = #tpu.dot_dimension_numbers<[1], [0], [0], [1], [0, 0, 1, 1], [], []>} : vector<8x8xbf16>, vector<8x256xbf16>, vector<8x256xf32> -> vector<8x256xf32>
    %31 = arith.addf %21, %30 : vector<8x256xf32>
    %32 = vector.extract_strided_slice %10 {offsets = [0, 249], sizes = [8, 7], strides = [1, 1]} : vector<8x256xbf16> to vector<8x7xbf16>
    %33 = vector.extract_strided_slice %10 {offsets = [0, 0], sizes = [8, 249], strides = [1, 1]} : vector<8x256xbf16> to vector<8x249xbf16>
    %34 = tpu.concatenate %32, %33 in 1 : vector<8x7xbf16>, vector<8x249xbf16> -> vector<8x256xbf16>
    %c2 = arith.constant 2 : index
    %c0_18 = arith.constant 0 : index
    %35 = vector.load %arg5[%c2, %c0_18] : memref<9x256xbf16, #tpu.memory_space<vmem>>, vector<1x256xbf16>
    %36 = vector.broadcast %35 : vector<1x256xbf16> to vector<8x256xbf16>
    %37 = arith.mulf %34, %36 : vector<8x256xbf16>
    %c2_19 = arith.constant 2 : index
    %c0_20 = arith.constant 0 : index
    %c0_21 = arith.constant 0 : index
    %38 = vector.load %arg4[%c2_19, %c0_20, %c0_21] : memref<9x8x8xbf16, #tpu.memory_space<vmem>>, vector<1x8x8xbf16>
    %39 = vector.shape_cast %38 : vector<1x8x8xbf16> to vector<8x8xbf16>
    %cst_22 = arith.constant dense<0.000000e+00> : vector<8x256xf32>
    %40 = tpu.matmul %39, %37, %cst_22 {dimension_numbers = #tpu.dot_dimension_numbers<[1], [0], [0], [1], [0, 0, 1, 1], [], []>} : vector<8x8xbf16>, vector<8x256xbf16>, vector<8x256xf32> -> vector<8x256xf32>
    %41 = arith.addf %31, %40 : vector<8x256xf32>
    %42 = vector.extract_strided_slice %10 {offsets = [0, 255], sizes = [8, 1], strides = [1, 1]} : vector<8x256xbf16> to vector<8x1xbf16>
    %43 = vector.extract_strided_slice %10 {offsets = [0, 0], sizes = [8, 255], strides = [1, 1]} : vector<8x256xbf16> to vector<8x255xbf16>
    %44 = tpu.concatenate %42, %43 in 1 : vector<8x1xbf16>, vector<8x255xbf16> -> vector<8x256xbf16>
    %c3 = arith.constant 3 : index
    %c0_23 = arith.constant 0 : index
    %45 = vector.load %arg5[%c3, %c0_23] : memref<9x256xbf16, #tpu.memory_space<vmem>>, vector<1x256xbf16>
    %46 = vector.broadcast %45 : vector<1x256xbf16> to vector<8x256xbf16>
    %47 = arith.mulf %44, %46 : vector<8x256xbf16>
    %c3_24 = arith.constant 3 : index
    %c0_25 = arith.constant 0 : index
    %c0_26 = arith.constant 0 : index
    %48 = vector.load %arg4[%c3_24, %c0_25, %c0_26] : memref<9x8x8xbf16, #tpu.memory_space<vmem>>, vector<1x8x8xbf16>
    %49 = vector.shape_cast %48 : vector<1x8x8xbf16> to vector<8x8xbf16>
    %cst_27 = arith.constant dense<0.000000e+00> : vector<8x256xf32>
    %50 = tpu.matmul %49, %47, %cst_27 {dimension_numbers = #tpu.dot_dimension_numbers<[1], [0], [0], [1], [0, 0, 1, 1], [], []>} : vector<8x8xbf16>, vector<8x256xbf16>, vector<8x256xf32> -> vector<8x256xf32>
    %51 = arith.addf %41, %50 : vector<8x256xf32>
    %c4 = arith.constant 4 : index
    %c0_28 = arith.constant 0 : index
    %52 = vector.load %arg5[%c4, %c0_28] : memref<9x256xbf16, #tpu.memory_space<vmem>>, vector<1x256xbf16>
    %53 = vector.broadcast %52 : vector<1x256xbf16> to vector<8x256xbf16>
    %54 = arith.mulf %10, %53 : vector<8x256xbf16>
    %c4_29 = arith.constant 4 : index
    %c0_30 = arith.constant 0 : index
    %c0_31 = arith.constant 0 : index
    %55 = vector.load %arg4[%c4_29, %c0_30, %c0_31] : memref<9x8x8xbf16, #tpu.memory_space<vmem>>, vector<1x8x8xbf16>
    %56 = vector.shape_cast %55 : vector<1x8x8xbf16> to vector<8x8xbf16>
    %cst_32 = arith.constant dense<0.000000e+00> : vector<8x256xf32>
    %57 = tpu.matmul %56, %54, %cst_32 {dimension_numbers = #tpu.dot_dimension_numbers<[1], [0], [0], [1], [0, 0, 1, 1], [], []>} : vector<8x8xbf16>, vector<8x256xbf16>, vector<8x256xf32> -> vector<8x256xf32>
    %58 = arith.addf %51, %57 : vector<8x256xf32>
    %59 = vector.extract_strided_slice %10 {offsets = [0, 1], sizes = [8, 255], strides = [1, 1]} : vector<8x256xbf16> to vector<8x255xbf16>
    %60 = vector.extract_strided_slice %10 {offsets = [0, 0], sizes = [8, 1], strides = [1, 1]} : vector<8x256xbf16> to vector<8x1xbf16>
    %61 = tpu.concatenate %59, %60 in 1 : vector<8x255xbf16>, vector<8x1xbf16> -> vector<8x256xbf16>
    %c5 = arith.constant 5 : index
    %c0_33 = arith.constant 0 : index
    %62 = vector.load %arg5[%c5, %c0_33] : memref<9x256xbf16, #tpu.memory_space<vmem>>, vector<1x256xbf16>
    %63 = vector.broadcast %62 : vector<1x256xbf16> to vector<8x256xbf16>
    %64 = arith.mulf %61, %63 : vector<8x256xbf16>
    %c5_34 = arith.constant 5 : index
    %c0_35 = arith.constant 0 : index
    %c0_36 = arith.constant 0 : index
    %65 = vector.load %arg4[%c5_34, %c0_35, %c0_36] : memref<9x8x8xbf16, #tpu.memory_space<vmem>>, vector<1x8x8xbf16>
    %66 = vector.shape_cast %65 : vector<1x8x8xbf16> to vector<8x8xbf16>
    %cst_37 = arith.constant dense<0.000000e+00> : vector<8x256xf32>
    %67 = tpu.matmul %66, %64, %cst_37 {dimension_numbers = #tpu.dot_dimension_numbers<[1], [0], [0], [1], [0, 0, 1, 1], [], []>} : vector<8x8xbf16>, vector<8x256xbf16>, vector<8x256xf32> -> vector<8x256xf32>
    %68 = arith.addf %58, %67 : vector<8x256xf32>
    %69 = vector.extract_strided_slice %10 {offsets = [0, 7], sizes = [8, 249], strides = [1, 1]} : vector<8x256xbf16> to vector<8x249xbf16>
    %70 = vector.extract_strided_slice %10 {offsets = [0, 0], sizes = [8, 7], strides = [1, 1]} : vector<8x256xbf16> to vector<8x7xbf16>
    %71 = tpu.concatenate %69, %70 in 1 : vector<8x249xbf16>, vector<8x7xbf16> -> vector<8x256xbf16>
    %c6 = arith.constant 6 : index
    %c0_38 = arith.constant 0 : index
    %72 = vector.load %arg5[%c6, %c0_38] : memref<9x256xbf16, #tpu.memory_space<vmem>>, vector<1x256xbf16>
    %73 = vector.broadcast %72 : vector<1x256xbf16> to vector<8x256xbf16>
    %74 = arith.mulf %71, %73 : vector<8x256xbf16>
    %c6_39 = arith.constant 6 : index
    %c0_40 = arith.constant 0 : index
    %c0_41 = arith.constant 0 : index
    %75 = vector.load %arg4[%c6_39, %c0_40, %c0_41] : memref<9x8x8xbf16, #tpu.memory_space<vmem>>, vector<1x8x8xbf16>
    %76 = vector.shape_cast %75 : vector<1x8x8xbf16> to vector<8x8xbf16>
    %cst_42 = arith.constant dense<0.000000e+00> : vector<8x256xf32>
    %77 = tpu.matmul %76, %74, %cst_42 {dimension_numbers = #tpu.dot_dimension_numbers<[1], [0], [0], [1], [0, 0, 1, 1], [], []>} : vector<8x8xbf16>, vector<8x256xbf16>, vector<8x256xf32> -> vector<8x256xf32>
    %78 = arith.addf %68, %77 : vector<8x256xf32>
    %79 = vector.extract_strided_slice %10 {offsets = [0, 8], sizes = [8, 248], strides = [1, 1]} : vector<8x256xbf16> to vector<8x248xbf16>
    %80 = vector.extract_strided_slice %10 {offsets = [0, 0], sizes = [8, 8], strides = [1, 1]} : vector<8x256xbf16> to vector<8x8xbf16>
    %81 = tpu.concatenate %79, %80 in 1 : vector<8x248xbf16>, vector<8x8xbf16> -> vector<8x256xbf16>
    %c7 = arith.constant 7 : index
    %c0_43 = arith.constant 0 : index
    %82 = vector.load %arg5[%c7, %c0_43] : memref<9x256xbf16, #tpu.memory_space<vmem>>, vector<1x256xbf16>
    %83 = vector.broadcast %82 : vector<1x256xbf16> to vector<8x256xbf16>
    %84 = arith.mulf %81, %83 : vector<8x256xbf16>
    %c7_44 = arith.constant 7 : index
    %c0_45 = arith.constant 0 : index
    %c0_46 = arith.constant 0 : index
    %85 = vector.load %arg4[%c7_44, %c0_45, %c0_46] : memref<9x8x8xbf16, #tpu.memory_space<vmem>>, vector<1x8x8xbf16>
    %86 = vector.shape_cast %85 : vector<1x8x8xbf16> to vector<8x8xbf16>
    %cst_47 = arith.constant dense<0.000000e+00> : vector<8x256xf32>
    %87 = tpu.matmul %86, %84, %cst_47 {dimension_numbers = #tpu.dot_dimension_numbers<[1], [0], [0], [1], [0, 0, 1, 1], [], []>} : vector<8x8xbf16>, vector<8x256xbf16>, vector<8x256xf32> -> vector<8x256xf32>
    %88 = arith.addf %78, %87 : vector<8x256xf32>
    %89 = vector.extract_strided_slice %10 {offsets = [0, 9], sizes = [8, 247], strides = [1, 1]} : vector<8x256xbf16> to vector<8x247xbf16>
    %90 = vector.extract_strided_slice %10 {offsets = [0, 0], sizes = [8, 9], strides = [1, 1]} : vector<8x256xbf16> to vector<8x9xbf16>
    %91 = tpu.concatenate %89, %90 in 1 : vector<8x247xbf16>, vector<8x9xbf16> -> vector<8x256xbf16>
    %c8 = arith.constant 8 : index
    %c0_48 = arith.constant 0 : index
    %92 = vector.load %arg5[%c8, %c0_48] : memref<9x256xbf16, #tpu.memory_space<vmem>>, vector<1x256xbf16>
    %93 = vector.broadcast %92 : vector<1x256xbf16> to vector<8x256xbf16>
    %94 = arith.mulf %91, %93 : vector<8x256xbf16>
    %c8_49 = arith.constant 8 : index
    %c0_50 = arith.constant 0 : index
    %c0_51 = arith.constant 0 : index
    %95 = vector.load %arg4[%c8_49, %c0_50, %c0_51] : memref<9x8x8xbf16, #tpu.memory_space<vmem>>, vector<1x8x8xbf16>
    %96 = vector.shape_cast %95 : vector<1x8x8xbf16> to vector<8x8xbf16>
    %cst_52 = arith.constant dense<0.000000e+00> : vector<8x256xf32>
    %97 = tpu.matmul %96, %94, %cst_52 {dimension_numbers = #tpu.dot_dimension_numbers<[1], [0], [0], [1], [0, 0, 1, 1], [], []>} : vector<8x8xbf16>, vector<8x256xbf16>, vector<8x256xf32> -> vector<8x256xf32>
    %98 = arith.addf %88, %97 : vector<8x256xf32>
    %c0_53 = arith.constant 0 : index
    %c0_54 = arith.constant 0 : index
    %c0_55 = arith.constant 0 : index
    %99 = vector.load %arg6[%c0_53, %c0_54, %c0_55] : memref<1x8x256xf32, #tpu.memory_space<vmem>>, vector<1x8x256xf32>
    %100 = vector.shape_cast %99 : vector<1x8x256xf32> to vector<8x256xf32>
    %101 = vector.shape_cast %98 : vector<8x256xf32> to vector<1x8x256xf32>
    tpu.vector_store %arg6[%c0_53, %c0_54, %c0_55], %101 {strides = array<i32>} : memref<1x8x256xf32, #tpu.memory_space<vmem>>, vector<1x8x256xf32>,
    %cst_56 = arith.constant dense<0.000000e+00> : vector<8xf32>
    %102 = vector.multi_reduction <add>, %98, %cst_56 [1] : vector<8x256xf32> to vector<8xf32>
    %103 = vector.shape_cast %102 : vector<8xf32> to vector<8x1xf32>
    %c0_57 = arith.constant 0 : index
    %c0_58 = arith.constant 0 : index
    %c0_59 = arith.constant 0 : index
    %104 = vector.load %arg7[%c0_57, %c0_58, %c0_59] : memref<1x8x2xf32, #tpu.memory_space<vmem>>, vector<1x8x1xf32>
    %105 = vector.shape_cast %104 : vector<1x8x1xf32> to vector<8x1xf32>
    %106 = vector.shape_cast %103 : vector<8x1xf32> to vector<1x8x1xf32>
    tpu.vector_store %arg7[%c0_57, %c0_58, %c0_59], %106 {strides = array<i32>} : memref<1x8x2xf32, #tpu.memory_space<vmem>>, vector<1x8x1xf32>,
    %107 = arith.mulf %98, %98 : vector<8x256xf32>
    %cst_60 = arith.constant dense<0.000000e+00> : vector<8xf32>
    %108 = vector.multi_reduction <add>, %107, %cst_60 [1] : vector<8x256xf32> to vector<8xf32>
    %109 = vector.shape_cast %108 : vector<8xf32> to vector<8x1xf32>
    %c0_61 = arith.constant 0 : index
    %c0_62 = arith.constant 0 : index
    %c1_63 = arith.constant 1 : index
    %110 = vector.load %arg7[%c0_61, %c0_62, %c1_63] : memref<1x8x2xf32, #tpu.memory_space<vmem>>, vector<1x8x1xf32>
    %111 = vector.shape_cast %110 : vector<1x8x1xf32> to vector<8x1xf32>
    %112 = vector.shape_cast %109 : vector<8x1xf32> to vector<1x8x1xf32>
    tpu.vector_store %arg7[%c0_61, %c0_62, %c1_63], %112 {strides = array<i32>} : memref<1x8x2xf32, #tpu.memory_space<vmem>>, vector<1x8x1xf32>,
    return
  }
  func.func @transform_0(%arg0: i32) -> (i32, i32, i32) {
    %c0_i32 = arith.constant 0 : i32
    %c0_i32_0 = arith.constant 0 : i32
    %c0_i32_1 = arith.constant 0 : i32
    return %arg0, %c0_i32, %c0_i32_0 : i32, i32, i32
  }
  func.func @transform_1(%arg0: i32) -> (i32, i32) {
    %c0_i32 = arith.constant 0 : i32
    %c0_i32_0 = arith.constant 0 : i32
    %c0_i32_1 = arith.constant 0 : i32
    return %c0_i32, %c0_i32_0 : i32, i32
  }
  func.func @transform_2(%arg0: i32) -> (i32, i32) {
    %c0_i32 = arith.constant 0 : i32
    %c0_i32_0 = arith.constant 0 : i32
    %c0_i32_1 = arith.constant 0 : i32
    return %c0_i32, %c0_i32_0 : i32, i32
  }
  func.func @transform_3(%arg0: i32) -> (i32, i32, i32) {
    %c0_i32 = arith.constant 0 : i32
    %c0_i32_0 = arith.constant 0 : i32
    %c0_i32_1 = arith.constant 0 : i32
    %c0_i32_2 = arith.constant 0 : i32
    return %c0_i32, %c0_i32_0, %c0_i32_1 : i32, i32, i32
  }
  func.func @transform_4(%arg0: i32) -> (i32, i32) {
    %c0_i32 = arith.constant 0 : i32
    %c0_i32_0 = arith.constant 0 : i32
    %c0_i32_1 = arith.constant 0 : i32
    return %c0_i32, %c0_i32_0 : i32, i32
  }
  func.func @transform_5(%arg0: i32) -> (i32, i32, i32) {
    %c0_i32 = arith.constant 0 : i32
    %c0_i32_0 = arith.constant 0 : i32
    %c0_i32_1 = arith.constant 0 : i32
    return %arg0, %c0_i32, %c0_i32_0 : i32, i32, i32
  }
  func.func @transform_6(%arg0: i32) -> (i32, i32, i32) {
    %c0_i32 = arith.constant 0 : i32
    %c0_i32_0 = arith.constant 0 : i32
    %c0_i32_1 = arith.constant 0 : i32
    return %arg0, %c0_i32, %c0_i32_0 : i32, i32, i32
  }
}

module attributes {stable_mosaic.version = 11 : i64} {
  func.func @kernel(%arg0: i32, %arg1: memref<1x4x8x256xbf16, #tpu.memory_space<vmem>>, %arg2: memref<9x8x8xbf16, #tpu.memory_space<vmem>>, %arg3: memref<9x256xbf16, #tpu.memory_space<vmem>>, %arg4: memref<1x8x256xf32, #tpu.memory_space<vmem>>, %arg5: memref<1x8x2xf32, #tpu.memory_space<vmem>>) attributes {dimension_semantics = [#tpu.dimension_semantics<parallel>], iteration_bounds = array<i64: 1>, scalar_prefetch = 0 : i64, scratch_operands = 0 : i64, tpu.core_type = #tpu.core_type<tc>, window_params = [{transform_indices = @transform_0, window_bounds = array<i64: 1, 4, 8, 256>}, {pipeline_mode = #tpu.pipeline_mode<synchronous>, transform_indices = @transform_1, window_bounds = array<i64: 9, 8, 8>}, {pipeline_mode = #tpu.pipeline_mode<synchronous>, transform_indices = @transform_2, window_bounds = array<i64: 9, 256>}, {transform_indices = @transform_3, window_bounds = array<i64: 1, 8, 256>}, {transform_indices = @transform_4, window_bounds = array<i64: 1, 8, 2>}]} {
    %c0 = arith.constant 0 : index
    %c0_0 = arith.constant 0 : index
    %c0_1 = arith.constant 0 : index
    %c0_2 = arith.constant 0 : index
    %0 = vector.load %arg1[%c0, %c0_0, %c0_1, %c0_2] : memref<1x4x8x256xbf16, #tpu.memory_space<vmem>>, vector<1x1x8x256xbf16>
    %1 = vector.shape_cast %0 : vector<1x1x8x256xbf16> to vector<8x256xbf16>
    %c0_3 = arith.constant 0 : index
    %c1 = arith.constant 1 : index
    %c0_4 = arith.constant 0 : index
    %c0_5 = arith.constant 0 : index
    %2 = vector.load %arg1[%c0_3, %c1, %c0_4, %c0_5] : memref<1x4x8x256xbf16, #tpu.memory_space<vmem>>, vector<1x1x8x256xbf16>
    %3 = vector.shape_cast %2 : vector<1x1x8x256xbf16> to vector<8x256xbf16>
    %c0_6 = arith.constant 0 : index
    %c2 = arith.constant 2 : index
    %c0_7 = arith.constant 0 : index
    %c0_8 = arith.constant 0 : index
    %4 = vector.load %arg1[%c0_6, %c2, %c0_7, %c0_8] : memref<1x4x8x256xbf16, #tpu.memory_space<vmem>>, vector<1x1x8x256xbf16>
    %5 = vector.shape_cast %4 : vector<1x1x8x256xbf16> to vector<8x256xbf16>
    %c0_9 = arith.constant 0 : index
    %c3 = arith.constant 3 : index
    %c0_10 = arith.constant 0 : index
    %c0_11 = arith.constant 0 : index
    %6 = vector.load %arg1[%c0_9, %c3, %c0_10, %c0_11] : memref<1x4x8x256xbf16, #tpu.memory_space<vmem>>, vector<1x1x8x256xbf16>
    %7 = vector.shape_cast %6 : vector<1x1x8x256xbf16> to vector<8x256xbf16>
    %cst = arith.constant 0.000000e+00 : f32
    %8 = vector.broadcast %cst : f32 to vector<8x256xf32>
    %9 = vector.extract_strided_slice %7 {offsets = [0, 247], sizes = [8, 9], strides = [1, 1]} : vector<8x256xbf16> to vector<8x9xbf16>
    %10 = vector.extract_strided_slice %7 {offsets = [0, 0], sizes = [8, 247], strides = [1, 1]} : vector<8x256xbf16> to vector<8x247xbf16>
    %11 = tpu.concatenate %9, %10 in 1 : vector<8x9xbf16>, vector<8x247xbf16> -> vector<8x256xbf16>
    %c0_12 = arith.constant 0 : index
    %c0_13 = arith.constant 0 : index
    %12 = vector.load %arg3[%c0_12, %c0_13] : memref<9x256xbf16, #tpu.memory_space<vmem>>, vector<1x256xbf16>
    %13 = vector.broadcast %12 : vector<1x256xbf16> to vector<8x256xbf16>
    %14 = arith.mulf %11, %13 : vector<8x256xbf16>
    %c0_14 = arith.constant 0 : index
    %c0_15 = arith.constant 0 : index
    %c0_16 = arith.constant 0 : index
    %15 = vector.load %arg2[%c0_14, %c0_15, %c0_16] : memref<9x8x8xbf16, #tpu.memory_space<vmem>>, vector<1x8x8xbf16>
    %16 = vector.shape_cast %15 : vector<1x8x8xbf16> to vector<8x8xbf16>
    %cst_17 = arith.constant dense<0.000000e+00> : vector<8x256xf32>
    %17 = tpu.matmul %16, %14, %cst_17 {dimension_numbers = #tpu.dot_dimension_numbers<[1], [0], [0], [1], [0, 0, 1, 1], [], []>} : vector<8x8xbf16>, vector<8x256xbf16>, vector<8x256xf32> -> vector<8x256xf32>
    %18 = arith.addf %8, %17 : vector<8x256xf32>
    %19 = vector.extract_strided_slice %5 {offsets = [0, 248], sizes = [8, 8], strides = [1, 1]} : vector<8x256xbf16> to vector<8x8xbf16>
    %20 = vector.extract_strided_slice %5 {offsets = [0, 0], sizes = [8, 248], strides = [1, 1]} : vector<8x256xbf16> to vector<8x248xbf16>
    %21 = tpu.concatenate %19, %20 in 1 : vector<8x8xbf16>, vector<8x248xbf16> -> vector<8x256xbf16>
    %c1_18 = arith.constant 1 : index
    %c0_19 = arith.constant 0 : index
    %22 = vector.load %arg3[%c1_18, %c0_19] : memref<9x256xbf16, #tpu.memory_space<vmem>>, vector<1x256xbf16>
    %23 = vector.broadcast %22 : vector<1x256xbf16> to vector<8x256xbf16>
    %24 = arith.mulf %21, %23 : vector<8x256xbf16>
    %c1_20 = arith.constant 1 : index
    %c0_21 = arith.constant 0 : index
    %c0_22 = arith.constant 0 : index
    %25 = vector.load %arg2[%c1_20, %c0_21, %c0_22] : memref<9x8x8xbf16, #tpu.memory_space<vmem>>, vector<1x8x8xbf16>
    %26 = vector.shape_cast %25 : vector<1x8x8xbf16> to vector<8x8xbf16>
    %cst_23 = arith.constant dense<0.000000e+00> : vector<8x256xf32>
    %27 = tpu.matmul %26, %24, %cst_23 {dimension_numbers = #tpu.dot_dimension_numbers<[1], [0], [0], [1], [0, 0, 1, 1], [], []>} : vector<8x8xbf16>, vector<8x256xbf16>, vector<8x256xf32> -> vector<8x256xf32>
    %28 = arith.addf %18, %27 : vector<8x256xf32>
    %29 = vector.extract_strided_slice %7 {offsets = [0, 248], sizes = [8, 8], strides = [1, 1]} : vector<8x256xbf16> to vector<8x8xbf16>
    %30 = vector.extract_strided_slice %7 {offsets = [0, 0], sizes = [8, 248], strides = [1, 1]} : vector<8x256xbf16> to vector<8x248xbf16>
    %31 = tpu.concatenate %29, %30 in 1 : vector<8x8xbf16>, vector<8x248xbf16> -> vector<8x256xbf16>
    %c2_24 = arith.constant 2 : index
    %c0_25 = arith.constant 0 : index
    %32 = vector.load %arg3[%c2_24, %c0_25] : memref<9x256xbf16, #tpu.memory_space<vmem>>, vector<1x256xbf16>
    %33 = vector.broadcast %32 : vector<1x256xbf16> to vector<8x256xbf16>
    %34 = arith.mulf %31, %33 : vector<8x256xbf16>
    %c2_26 = arith.constant 2 : index
    %c0_27 = arith.constant 0 : index
    %c0_28 = arith.constant 0 : index
    %35 = vector.load %arg2[%c2_26, %c0_27, %c0_28] : memref<9x8x8xbf16, #tpu.memory_space<vmem>>, vector<1x8x8xbf16>
    %36 = vector.shape_cast %35 : vector<1x8x8xbf16> to vector<8x8xbf16>
    %cst_29 = arith.constant dense<0.000000e+00> : vector<8x256xf32>
    %37 = tpu.matmul %36, %34, %cst_29 {dimension_numbers = #tpu.dot_dimension_numbers<[1], [0], [0], [1], [0, 0, 1, 1], [], []>} : vector<8x8xbf16>, vector<8x256xbf16>, vector<8x256xf32> -> vector<8x256xf32>
    %38 = arith.addf %28, %37 : vector<8x256xf32>
    %39 = vector.extract_strided_slice %3 {offsets = [0, 255], sizes = [8, 1], strides = [1, 1]} : vector<8x256xbf16> to vector<8x1xbf16>
    %40 = vector.extract_strided_slice %3 {offsets = [0, 0], sizes = [8, 255], strides = [1, 1]} : vector<8x256xbf16> to vector<8x255xbf16>
    %41 = tpu.concatenate %39, %40 in 1 : vector<8x1xbf16>, vector<8x255xbf16> -> vector<8x256xbf16>
    %c3_30 = arith.constant 3 : index
    %c0_31 = arith.constant 0 : index
    %42 = vector.load %arg3[%c3_30, %c0_31] : memref<9x256xbf16, #tpu.memory_space<vmem>>, vector<1x256xbf16>
    %43 = vector.broadcast %42 : vector<1x256xbf16> to vector<8x256xbf16>
    %44 = arith.mulf %41, %43 : vector<8x256xbf16>
    %c3_32 = arith.constant 3 : index
    %c0_33 = arith.constant 0 : index
    %c0_34 = arith.constant 0 : index
    %45 = vector.load %arg2[%c3_32, %c0_33, %c0_34] : memref<9x8x8xbf16, #tpu.memory_space<vmem>>, vector<1x8x8xbf16>
    %46 = vector.shape_cast %45 : vector<1x8x8xbf16> to vector<8x8xbf16>
    %cst_35 = arith.constant dense<0.000000e+00> : vector<8x256xf32>
    %47 = tpu.matmul %46, %44, %cst_35 {dimension_numbers = #tpu.dot_dimension_numbers<[1], [0], [0], [1], [0, 0, 1, 1], [], []>} : vector<8x8xbf16>, vector<8x256xbf16>, vector<8x256xf32> -> vector<8x256xf32>
    %48 = arith.addf %38, %47 : vector<8x256xf32>
    %c4 = arith.constant 4 : index
    %c0_36 = arith.constant 0 : index
    %49 = vector.load %arg3[%c4, %c0_36] : memref<9x256xbf16, #tpu.memory_space<vmem>>, vector<1x256xbf16>
    %50 = vector.broadcast %49 : vector<1x256xbf16> to vector<8x256xbf16>
    %51 = arith.mulf %1, %50 : vector<8x256xbf16>
    %c4_37 = arith.constant 4 : index
    %c0_38 = arith.constant 0 : index
    %c0_39 = arith.constant 0 : index
    %52 = vector.load %arg2[%c4_37, %c0_38, %c0_39] : memref<9x8x8xbf16, #tpu.memory_space<vmem>>, vector<1x8x8xbf16>
    %53 = vector.shape_cast %52 : vector<1x8x8xbf16> to vector<8x8xbf16>
    %cst_40 = arith.constant dense<0.000000e+00> : vector<8x256xf32>
    %54 = tpu.matmul %53, %51, %cst_40 {dimension_numbers = #tpu.dot_dimension_numbers<[1], [0], [0], [1], [0, 0, 1, 1], [], []>} : vector<8x8xbf16>, vector<8x256xbf16>, vector<8x256xf32> -> vector<8x256xf32>
    %55 = arith.addf %48, %54 : vector<8x256xf32>
    %c5 = arith.constant 5 : index
    %c0_41 = arith.constant 0 : index
    %56 = vector.load %arg3[%c5, %c0_41] : memref<9x256xbf16, #tpu.memory_space<vmem>>, vector<1x256xbf16>
    %57 = vector.broadcast %56 : vector<1x256xbf16> to vector<8x256xbf16>
    %58 = arith.mulf %3, %57 : vector<8x256xbf16>
    %c5_42 = arith.constant 5 : index
    %c0_43 = arith.constant 0 : index
    %c0_44 = arith.constant 0 : index
    %59 = vector.load %arg2[%c5_42, %c0_43, %c0_44] : memref<9x8x8xbf16, #tpu.memory_space<vmem>>, vector<1x8x8xbf16>
    %60 = vector.shape_cast %59 : vector<1x8x8xbf16> to vector<8x8xbf16>
    %cst_45 = arith.constant dense<0.000000e+00> : vector<8x256xf32>
    %61 = tpu.matmul %60, %58, %cst_45 {dimension_numbers = #tpu.dot_dimension_numbers<[1], [0], [0], [1], [0, 0, 1, 1], [], []>} : vector<8x8xbf16>, vector<8x256xbf16>, vector<8x256xf32> -> vector<8x256xf32>
    %62 = arith.addf %55, %61 : vector<8x256xf32>
    %63 = vector.extract_strided_slice %7 {offsets = [0, 255], sizes = [8, 1], strides = [1, 1]} : vector<8x256xbf16> to vector<8x1xbf16>
    %64 = vector.extract_strided_slice %7 {offsets = [0, 0], sizes = [8, 255], strides = [1, 1]} : vector<8x256xbf16> to vector<8x255xbf16>
    %65 = tpu.concatenate %63, %64 in 1 : vector<8x1xbf16>, vector<8x255xbf16> -> vector<8x256xbf16>
    %c6 = arith.constant 6 : index
    %c0_46 = arith.constant 0 : index
    %66 = vector.load %arg3[%c6, %c0_46] : memref<9x256xbf16, #tpu.memory_space<vmem>>, vector<1x256xbf16>
    %67 = vector.broadcast %66 : vector<1x256xbf16> to vector<8x256xbf16>
    %68 = arith.mulf %65, %67 : vector<8x256xbf16>
    %c6_47 = arith.constant 6 : index
    %c0_48 = arith.constant 0 : index
    %c0_49 = arith.constant 0 : index
    %69 = vector.load %arg2[%c6_47, %c0_48, %c0_49] : memref<9x8x8xbf16, #tpu.memory_space<vmem>>, vector<1x8x8xbf16>
    %70 = vector.shape_cast %69 : vector<1x8x8xbf16> to vector<8x8xbf16>
    %cst_50 = arith.constant dense<0.000000e+00> : vector<8x256xf32>
    %71 = tpu.matmul %70, %68, %cst_50 {dimension_numbers = #tpu.dot_dimension_numbers<[1], [0], [0], [1], [0, 0, 1, 1], [], []>} : vector<8x8xbf16>, vector<8x256xbf16>, vector<8x256xf32> -> vector<8x256xf32>
    %72 = arith.addf %62, %71 : vector<8x256xf32>
    %c7 = arith.constant 7 : index
    %c0_51 = arith.constant 0 : index
    %73 = vector.load %arg3[%c7, %c0_51] : memref<9x256xbf16, #tpu.memory_space<vmem>>, vector<1x256xbf16>
    %74 = vector.broadcast %73 : vector<1x256xbf16> to vector<8x256xbf16>
    %75 = arith.mulf %5, %74 : vector<8x256xbf16>
    %c7_52 = arith.constant 7 : index
    %c0_53 = arith.constant 0 : index
    %c0_54 = arith.constant 0 : index
    %76 = vector.load %arg2[%c7_52, %c0_53, %c0_54] : memref<9x8x8xbf16, #tpu.memory_space<vmem>>, vector<1x8x8xbf16>
    %77 = vector.shape_cast %76 : vector<1x8x8xbf16> to vector<8x8xbf16>
    %cst_55 = arith.constant dense<0.000000e+00> : vector<8x256xf32>
    %78 = tpu.matmul %77, %75, %cst_55 {dimension_numbers = #tpu.dot_dimension_numbers<[1], [0], [0], [1], [0, 0, 1, 1], [], []>} : vector<8x8xbf16>, vector<8x256xbf16>, vector<8x256xf32> -> vector<8x256xf32>
    %79 = arith.addf %72, %78 : vector<8x256xf32>
    %c8 = arith.constant 8 : index
    %c0_56 = arith.constant 0 : index
    %80 = vector.load %arg3[%c8, %c0_56] : memref<9x256xbf16, #tpu.memory_space<vmem>>, vector<1x256xbf16>
    %81 = vector.broadcast %80 : vector<1x256xbf16> to vector<8x256xbf16>
    %82 = arith.mulf %7, %81 : vector<8x256xbf16>
    %c8_57 = arith.constant 8 : index
    %c0_58 = arith.constant 0 : index
    %c0_59 = arith.constant 0 : index
    %83 = vector.load %arg2[%c8_57, %c0_58, %c0_59] : memref<9x8x8xbf16, #tpu.memory_space<vmem>>, vector<1x8x8xbf16>
    %84 = vector.shape_cast %83 : vector<1x8x8xbf16> to vector<8x8xbf16>
    %cst_60 = arith.constant dense<0.000000e+00> : vector<8x256xf32>
    %85 = tpu.matmul %84, %82, %cst_60 {dimension_numbers = #tpu.dot_dimension_numbers<[1], [0], [0], [1], [0, 0, 1, 1], [], []>} : vector<8x8xbf16>, vector<8x256xbf16>, vector<8x256xf32> -> vector<8x256xf32>
    %86 = arith.addf %79, %85 : vector<8x256xf32>
    %c0_61 = arith.constant 0 : index
    %c0_62 = arith.constant 0 : index
    %c0_63 = arith.constant 0 : index
    %87 = vector.load %arg4[%c0_61, %c0_62, %c0_63] : memref<1x8x256xf32, #tpu.memory_space<vmem>>, vector<1x8x256xf32>
    %88 = vector.shape_cast %87 : vector<1x8x256xf32> to vector<8x256xf32>
    %89 = vector.shape_cast %86 : vector<8x256xf32> to vector<1x8x256xf32>
    tpu.vector_store %arg4[%c0_61, %c0_62, %c0_63], %89 {strides = array<i32>} : memref<1x8x256xf32, #tpu.memory_space<vmem>>, vector<1x8x256xf32>,
    %cst_64 = arith.constant dense<0.000000e+00> : vector<8xf32>
    %90 = vector.multi_reduction <add>, %86, %cst_64 [1] : vector<8x256xf32> to vector<8xf32>
    %91 = vector.shape_cast %90 : vector<8xf32> to vector<8x1xf32>
    %c0_65 = arith.constant 0 : index
    %c0_66 = arith.constant 0 : index
    %c0_67 = arith.constant 0 : index
    %92 = vector.load %arg5[%c0_65, %c0_66, %c0_67] : memref<1x8x2xf32, #tpu.memory_space<vmem>>, vector<1x8x1xf32>
    %93 = vector.shape_cast %92 : vector<1x8x1xf32> to vector<8x1xf32>
    %94 = vector.shape_cast %91 : vector<8x1xf32> to vector<1x8x1xf32>
    tpu.vector_store %arg5[%c0_65, %c0_66, %c0_67], %94 {strides = array<i32>} : memref<1x8x2xf32, #tpu.memory_space<vmem>>, vector<1x8x1xf32>,
    %95 = arith.mulf %86, %86 : vector<8x256xf32>
    %cst_68 = arith.constant dense<0.000000e+00> : vector<8xf32>
    %96 = vector.multi_reduction <add>, %95, %cst_68 [1] : vector<8x256xf32> to vector<8xf32>
    %97 = vector.shape_cast %96 : vector<8xf32> to vector<8x1xf32>
    %c0_69 = arith.constant 0 : index
    %c0_70 = arith.constant 0 : index
    %c1_71 = arith.constant 1 : index
    %98 = vector.load %arg5[%c0_69, %c0_70, %c1_71] : memref<1x8x2xf32, #tpu.memory_space<vmem>>, vector<1x8x1xf32>
    %99 = vector.shape_cast %98 : vector<1x8x1xf32> to vector<8x1xf32>
    %100 = vector.shape_cast %97 : vector<8x1xf32> to vector<1x8x1xf32>
    tpu.vector_store %arg5[%c0_69, %c0_70, %c1_71], %100 {strides = array<i32>} : memref<1x8x2xf32, #tpu.memory_space<vmem>>, vector<1x8x1xf32>,
    return
  }
  func.func @transform_0(%arg0: i32) -> (i32, i32, i32, i32) {
    %c0_i32 = arith.constant 0 : i32
    %c0_i32_0 = arith.constant 0 : i32
    %c0_i32_1 = arith.constant 0 : i32
    %c0_i32_2 = arith.constant 0 : i32
    return %arg0, %c0_i32, %c0_i32_0, %c0_i32_1 : i32, i32, i32, i32
  }
  func.func @transform_1(%arg0: i32) -> (i32, i32, i32) {
    %c0_i32 = arith.constant 0 : i32
    %c0_i32_0 = arith.constant 0 : i32
    %c0_i32_1 = arith.constant 0 : i32
    %c0_i32_2 = arith.constant 0 : i32
    return %c0_i32, %c0_i32_0, %c0_i32_1 : i32, i32, i32
  }
  func.func @transform_2(%arg0: i32) -> (i32, i32) {
    %c0_i32 = arith.constant 0 : i32
    %c0_i32_0 = arith.constant 0 : i32
    %c0_i32_1 = arith.constant 0 : i32
    return %c0_i32, %c0_i32_0 : i32, i32
  }
  func.func @transform_3(%arg0: i32) -> (i32, i32, i32) {
    %c0_i32 = arith.constant 0 : i32
    %c0_i32_0 = arith.constant 0 : i32
    %c0_i32_1 = arith.constant 0 : i32
    return %arg0, %c0_i32, %c0_i32_0 : i32, i32, i32
  }
  func.func @transform_4(%arg0: i32) -> (i32, i32, i32) {
    %c0_i32 = arith.constant 0 : i32
    %c0_i32_0 = arith.constant 0 : i32
    %c0_i32_1 = arith.constant 0 : i32
    return %arg0, %c0_i32, %c0_i32_0 : i32, i32, i32
  }
}

module attributes {stable_mosaic.version = 11 : i64} {
  func.func @_finalize_kernel(%arg0: i32, %arg1: memref<1x8x256xf32, #tpu.memory_space<vmem>>, %arg2: memref<8x1xf32, #tpu.memory_space<vmem>>, %arg3: memref<8x1xf32, #tpu.memory_space<vmem>>, %arg4: memref<1x8x256xf32, #tpu.memory_space<vmem>>, %arg5: memref<1x8x256xf32, #tpu.memory_space<vmem>>) attributes {dimension_semantics = [#tpu.dimension_semantics<parallel>], iteration_bounds = array<i64: 1>, scalar_prefetch = 0 : i64, scratch_operands = 0 : i64, tpu.core_type = #tpu.core_type<tc>, window_params = [{transform_indices = @transform_0, window_bounds = array<i64: 1, 8, 256>}, {pipeline_mode = #tpu.pipeline_mode<synchronous>, transform_indices = @transform_1, window_bounds = array<i64: 8, 1>}, {pipeline_mode = #tpu.pipeline_mode<synchronous>, transform_indices = @transform_2, window_bounds = array<i64: 8, 1>}, {transform_indices = @transform_3, window_bounds = array<i64: 1, 8, 256>}, {transform_indices = @transform_4, window_bounds = array<i64: 1, 8, 256>}]} {
    %c0 = arith.constant 0 : index
    %c0_0 = arith.constant 0 : index
    %c0_1 = arith.constant 0 : index
    %0 = vector.load %arg1[%c0, %c0_0, %c0_1] : memref<1x8x256xf32, #tpu.memory_space<vmem>>, vector<1x8x256xf32>
    %1 = vector.shape_cast %0 : vector<1x8x256xf32> to vector<8x256xf32>
    %c0_2 = arith.constant 0 : index
    %c0_3 = arith.constant 0 : index
    %2 = vector.load %arg2[%c0_2, %c0_3] : memref<8x1xf32, #tpu.memory_space<vmem>>, vector<8x1xf32>
    %3 = vector.broadcast %2 : vector<8x1xf32> to vector<8x256xf32>
    %4 = arith.mulf %1, %3 : vector<8x256xf32>
    %c0_4 = arith.constant 0 : index
    %c0_5 = arith.constant 0 : index
    %5 = vector.load %arg3[%c0_4, %c0_5] : memref<8x1xf32, #tpu.memory_space<vmem>>, vector<8x1xf32>
    %6 = vector.broadcast %5 : vector<8x1xf32> to vector<8x256xf32>
    %7 = arith.addf %4, %6 : vector<8x256xf32>
    %c0_6 = arith.constant 0 : index
    %c0_7 = arith.constant 0 : index
    %c0_8 = arith.constant 0 : index
    %8 = vector.load %arg4[%c0_6, %c0_7, %c0_8] : memref<1x8x256xf32, #tpu.memory_space<vmem>>, vector<1x8x256xf32>
    %9 = vector.shape_cast %8 : vector<1x8x256xf32> to vector<8x256xf32>
    %10 = arith.addf %7, %9 : vector<8x256xf32>
    %cst = arith.constant 0.000000e+00 : f32
    %11 = vector.broadcast %cst : f32 to vector<8x256xf32>
    %12 = arith.maximumf %10, %11 : vector<8x256xf32>
    %c0_9 = arith.constant 0 : index
    %c0_10 = arith.constant 0 : index
    %c0_11 = arith.constant 0 : index
    %13 = vector.load %arg5[%c0_9, %c0_10, %c0_11] : memref<1x8x256xf32, #tpu.memory_space<vmem>>, vector<1x8x256xf32>
    %14 = vector.shape_cast %13 : vector<1x8x256xf32> to vector<8x256xf32>
    %15 = vector.shape_cast %12 : vector<8x256xf32> to vector<1x8x256xf32>
    tpu.vector_store %arg5[%c0_9, %c0_10, %c0_11], %15 {strides = array<i32>} : memref<1x8x256xf32, #tpu.memory_space<vmem>>, vector<1x8x256xf32>,
    return
  }
  func.func @transform_0(%arg0: i32) -> (i32, i32, i32) {
    %c0_i32 = arith.constant 0 : i32
    %c0_i32_0 = arith.constant 0 : i32
    %c0_i32_1 = arith.constant 0 : i32
    return %arg0, %c0_i32, %c0_i32_0 : i32, i32, i32
  }
  func.func @transform_1(%arg0: i32) -> (i32, i32) {
    %c0_i32 = arith.constant 0 : i32
    %c0_i32_0 = arith.constant 0 : i32
    %c0_i32_1 = arith.constant 0 : i32
    return %c0_i32, %c0_i32_0 : i32, i32
  }
  func.func @transform_2(%arg0: i32) -> (i32, i32) {
    %c0_i32 = arith.constant 0 : i32
    %c0_i32_0 = arith.constant 0 : i32
    %c0_i32_1 = arith.constant 0 : i32
    return %c0_i32, %c0_i32_0 : i32, i32
  }
  func.func @transform_3(%arg0: i32) -> (i32, i32, i32) {
    %c0_i32 = arith.constant 0 : i32
    %c0_i32_0 = arith.constant 0 : i32
    %c0_i32_1 = arith.constant 0 : i32
    return %arg0, %c0_i32, %c0_i32_0 : i32, i32, i32
  }
  func.func @transform_4(%arg0: i32) -> (i32, i32, i32) {
    %c0_i32 = arith.constant 0 : i32
    %c0_i32_0 = arith.constant 0 : i32
    %c0_i32_1 = arith.constant 0 : i32
    return %arg0, %c0_i32, %c0_i32_0 : i32, i32, i32
  }
}

</mosaic_0001>

<llo_original>
// kernel: basic_block_forward.5
$region0: #{basic_block_forward.5}
  #allocation0 [shape = 'u32[]', space=smem, size = 0x4, offset = 0x4, fixed_abs, tag = 'smem constant byte address 0x4 - core index']
  #allocation1 [shape = 'u32[144,128]{1,0:T(1,128)}', space=vmem, size = 0x12000, scoped, tag = 'internal scratch']
  %s0 = inlined_call_operand.vmem [shape: f32[1,8,256], index: 0, kind: input, shape index: {}]
  %s1 = inlined_call_operand.vmem [shape: f32[8,1], index: 1, kind: input, shape index: {}]
  %s2 = inlined_call_operand.vmem [shape: f32[8,1], index: 2, kind: input, shape index: {}]
  %s3 = inlined_call_operand.vmem [shape: f32[1,8,256], index: 3, kind: input, shape index: {}]
  %s4 = inlined_call_operand.vmem [shape: f32[1,8,256], index: 4, kind: output, shape index: {}]
  %s5 = sld [smem:[#allocation0]]
  $region26: #{basic_block_forward.5} parent=0
    _
  %s7 = ssub.s32 1, %s5
  %s8 = scalar_select 0, %s7, %s5
  // Predicated region
  $region2: #{basic_block_forward.5} parent=0 // pred_check
    _
  $region3: #{basic_block_forward.5} parent=0 // pred_check_branch
    %10 = sbr.rel (0) target = $region5
  $region4: #{basic_block_forward.5} parent=0 // pred_region
    _
  $region5: #{basic_block_forward.5} parent=0 // pred_fallthru
    _
  // Predicated region
  $region6: #{basic_block_forward.5} parent=0 // pred_check
    _
  $region7: #{basic_block_forward.5} parent=0 // pred_check_branch
    %12 = sbr.rel (0) target = $region9
  $region8: #{basic_block_forward.5} parent=0 // pred_region
    _
  $region9: #{basic_block_forward.5} parent=0 // pred_fallthru
    _
  // Predicated region
  $region10: #{basic_block_forward.5} parent=0 // pred_check
    _
  $region11: #{basic_block_forward.5} parent=0 // pred_check_branch
    %14 = sbr.rel (0) target = $region13
  $region12: #{basic_block_forward.5} parent=0 // pred_region
    _
  $region13: #{basic_block_forward.5} parent=0 // pred_fallthru
    _
  // Predicated region
  $region14: #{basic_block_forward.5} parent=0 // pred_check
    _
  $region15: #{basic_block_forward.5} parent=0 // pred_check_branch
    %16 = sbr.rel (0) target = $region17
  $region16: #{basic_block_forward.5} parent=0 // pred_region
    _
  $region17: #{basic_block_forward.5} parent=0 // pred_fallthru
    _
  %v17 = vld [vmem:[%s0] sm:$0xff]
  %v18 = vld [vmem:[%s0 + $0x8] sm:$0xff]
  %v19 = vld [vmem:[%s1] sm:$0xff]
  %21 = vset.pattern.permute.xlu0 0
  %22 = vperm.xlu0 %21, %v19
  %v23 = vpop.permute.xlu0 %22
  %v25 = vmul.f32 %v17, %v23
  %v26 = vmul.f32 %v18, %v23
  %v27 = vld [vmem:[%s2] sm:$0xff]
  %29 = vset.pattern.permute.xlu0 0
  %30 = vperm.xlu0 %29, %v27
  %v31 = vpop.permute.xlu0 %30
  %v33 = vadd.f32 %v25, %v31
  %v34 = vadd.f32 %v26, %v31
  %v35 = vld [vmem:[%s3] sm:$0xff]
  %v36 = vld [vmem:[%s3 + $0x8] sm:$0xff]
  %v37 = vadd.f32 %v33, %v35
  %v38 = vadd.f32 %v34, %v36
  %v39 = vmax.f32 %v37, 0.0
  %v40 = vmax.f32 %v38, 0.0
  %41 = vst [vmem:[%s4] sm:$0xff] %v39
  %42 = vst [vmem:[%s4 + $0x8] sm:$0xff] %v40
  // Predicated region
  $region18: #{basic_block_forward.5} parent=0 // pred_check
    _
  $region19: #{basic_block_forward.5} parent=0 // pred_check_branch
    %44 = sbr.rel (0) target = $region21
  $region20: #{basic_block_forward.5} parent=0 // pred_region
    _
  $region21: #{basic_block_forward.5} parent=0 // pred_fallthru
    _
  // Predicated region
  $region22: #{basic_block_forward.5} parent=0 // pred_check
    _
  $region23: #{basic_block_forward.5} parent=0 // pred_check_branch
    %46 = sbr.rel (0) target = $region25
  $region24: #{basic_block_forward.5} parent=0 // pred_region
    _
  $region25: #{basic_block_forward.5} parent=0 // pred_fallthru
    _

// kernel: basic_block_forward.3
$region0: #{basic_block_forward.3}
  #allocation0 [shape = 'u32[]', space=smem, size = 0x4, offset = 0x4, fixed_abs, tag = 'smem constant byte address 0x4 - core index']
  #allocation1 [shape = 'u32[144,128]{1,0:T(1,128)}', space=vmem, size = 0x12000, scoped, tag = 'internal scratch']
  %s0 = inlined_call_operand.vmem [shape: bf16[1,4,8,256], index: 0, kind: input, shape index: {}]
  %s1 = inlined_call_operand.vmem [shape: bf16[9,8,8], index: 1, kind: input, shape index: {}]
  %s2 = inlined_call_operand.vmem [shape: bf16[9,256], index: 2, kind: input, shape index: {}]
  %s3 = inlined_call_operand.vmem [shape: f32[1,8,256], index: 3, kind: output, shape index: {0}]
  %s4 = inlined_call_operand.vmem [shape: f32[1,8,2], index: 4, kind: output, shape index: {1}]
  %5 = xla_tuple %s3, %s4
  %s6 = sld [smem:[#allocation0]]
  $region30: #{basic_block_forward.3} parent=0
    _
  %s8 = ssub.s32 1, %s6
  %s9 = scalar_select 0, %s8, %s6
  // Predicated region
  $region2: #{basic_block_forward.3} parent=0 // pred_check
    _
  $region3: #{basic_block_forward.3} parent=0 // pred_check_branch
    %11 = sbr.rel (0) target = $region5
  $region4: #{basic_block_forward.3} parent=0 // pred_region
    _
  $region5: #{basic_block_forward.3} parent=0 // pred_fallthru
    _
  // Predicated region
  $region6: #{basic_block_forward.3} parent=0 // pred_check
    _
  $region7: #{basic_block_forward.3} parent=0 // pred_check_branch
    %13 = sbr.rel (0) target = $region9
  $region8: #{basic_block_forward.3} parent=0 // pred_region
    _
  $region9: #{basic_block_forward.3} parent=0 // pred_fallthru
    _
  // Predicated region
  $region10: #{basic_block_forward.3} parent=0 // pred_check
    _
  $region11: #{basic_block_forward.3} parent=0 // pred_check_branch
    %15 = sbr.rel (0) target = $region13
  $region12: #{basic_block_forward.3} parent=0 // pred_region
    _
  $region13: #{basic_block_forward.3} parent=0 // pred_fallthru
    _
  %v17 = vld [vmem:[%s0] sm:$0xff]
  %s18 = scalar_lea.vmem %s0, 8
  %v19 = vld [vmem:[%s18] sm:$0xff]
  %s20 = scalar_lea.vmem %s0, 16
  %v21 = vld [vmem:[%s20] sm:$0xff]
  %s22 = scalar_lea.vmem %s0, 24
  %v23 = vld [vmem:[%s22] sm:$0xff]
  %v25 = vunpack.c.h.b16 %v23
  %v26 = vpack.c.b16 %v25, %v25
  %27 = vrot.lane.b32.xlu0 %v26, 9
  %v28 = vpop.permute.xlu0 %27
  %v29 = vunpack.c.l.b16 %v23
  %v30 = vpack.c.b16 %v29, %v29
  %31 = vrot.lane.b32.xlu0 %v30, 9
  %v32 = vpop.permute.xlu0 %31
  %vm33 = vcmask 72704
  %v34 = vsel %vm33, %v32, %v28
  %vm36 = vcmask 72704
  %v39 = vsel %vm36, %v28, %v32
  %v41 = vld [vmem:[%s2] sm:$0x11]
  %v43 = vunpack.c.l.b16 %v41
  %v44 = vunpack.c.h.b16 %v41
  %v45 = vpack.c.b16 %v43, %v43
  %v46 = vpack.c.b16 %v44, %v44
  %v48 = vpack.i.b16 %v45, %v45
  %v50 = vlaneseq
  %v51 = vshrl.u32 %v50, 7
  %v52 = vsub.s32 0, %v51
  %v53 = vrot.slane %v48, %v52
  %v55 = vpack.i.b16 %v46, %v46
  %v57 = vlaneseq
  %v58 = vshrl.u32 %v57, 7
  %v59 = vsub.s32 0, %v58
  %v60 = vrot.slane %v55, %v59
  %v61 = vmul.bf16 %v39, %v53
  %v62 = vmul.bf16 %v34, %v60
  %v63 = vld [vmem:[%s1] sm:$0xf]
  %v65 = vunpack.c.h.b16 %v21
  %v66 = vpack.c.b16 %v65, %v65
  %67 = vrot.lane.b32.xlu0 %v66, 8
  %v68 = vpop.permute.xlu0 %67
  %v69 = vunpack.c.l.b16 %v21
  %v70 = vpack.c.b16 %v69, %v69
  %71 = vrot.lane.b32.xlu0 %v70, 8
  %v72 = vpop.permute.xlu0 %71
  %vm73 = vcmask 64512
  %v74 = vsel %vm73, %v72, %v68
  %vm76 = vcmask 64512
  %v79 = vsel %vm76, %v68, %v72
  %v81 = vshrl.u32 %v45, 16
  %v82 = vpack.i.b16 %v81, %v81
  %v84 = vlaneseq
  %v85 = vshrl.u32 %v84, 7
  %v86 = vsub.s32 0, %v85
  %v87 = vrot.slane %v82, %v86
  %v88 = vshrl.u32 %v46, 16
  %v89 = vpack.i.b16 %v88, %v88
  %v91 = vlaneseq
  %v92 = vshrl.u32 %v91, 7
  %v93 = vsub.s32 0, %v92
  %v94 = vrot.slane %v89, %v93
  %v95 = vmul.bf16 %v79, %v87
  %v96 = vmul.bf16 %v74, %v94
  %s97 = scalar_lea.vmem %s1, 4
  %v98 = vld [vmem:[%s97] sm:$0xf]
  %v100 = vsel %vm76, %v98, 0
  %vm102 = vcmask 1043456
  %v104 = vsel %vm102, %v95, 0
  %v107 = vsel %vm102, %v96, 0
  %109 = vmatprep.subr.bf16.mxu0 0
  %110 = vmatpush1.bf16.msra.mxu0 0
  %111 = vmatprep.subr.bf16.mxu0 0
  %112 = vmatpush1.bf16.msra.mxu0 0
  %113 = vmatprep.subr.bf16.mxu0 0
  %114 = vmatpush1.bf16.msra.mxu0 0
  %115 = vmatprep.subr.bf16.mxu0 0
  %116 = vmatpush1.bf16.msra.mxu0 0
  %117 = vmatprep.subr.bf16.mxu0 0
  %118 = vmatpush1.bf16.msra.mxu0 0
  %119 = vmatprep.subr.bf16.mxu0 0
  %120 = vmatpush1.bf16.msra.mxu0 0
  %121 = vmatprep.subr.bf16.mxu0 0
  %122 = vmatpush1.bf16.msra.mxu0 0
  %123 = vmatprep.subr.bf16.mxu0 %v107
  %124 = vmatpush1.bf16.msra.mxu0 %v104
  %125 = vmatprep.subr.bf16.mxu0 0
  %126 = vmatpush2.bf16.msra.mxu0 0
  %127 = vmatprep.subr.bf16.mxu0 0
  %128 = vmatpush2.bf16.msra.mxu0 0
  %129 = vmatprep.subr.bf16.mxu0 0
  %130 = vmatpush2.bf16.msra.mxu0 0
  %131 = vmatprep.subr.bf16.mxu0 0
  %132 = vmatpush2.bf16.msra.mxu0 0
  %133 = vmatprep.subr.bf16.mxu0 0
  %134 = vmatpush2.bf16.msra.mxu0 0
  %135 = vmatprep.subr.bf16.mxu0 0
  %136 = vmatpush2.bf16.msra.mxu0 0
  %137 = vmatprep.subr.bf16.mxu0 0
  %138 = vmatpush2.bf16.msra.mxu0 0
  %139 = vmatprep.subr.bf16.mxu0 0
  %140 = vmatpush2.bf16.msra.mxu0 0
  %141 = vmatprep.mubr.bf16.mxu0 0
  %142 = vmatmul.mubr.bf16.gmra.mxu0 %v100
  %v143 = vpop.f32.mrf.mxu0
  %v144 = vadd.f32 0.0, %v143
  %v145 = vpop.f32.mrf.mxu0
  %v146 = vadd.f32 0.0, %v145
  %v147 = vpop.f32.mrf.mxu0
  %v148 = vpop.f32.mrf.mxu0
  %149 = vdwg.mxu0
  %v151 = vsel %vm76, %v63, 0
  %v154 = vsel %vm102, %v61, 0
  %v157 = vsel %vm102, %v62, 0
  %159 = vmatprep.subr.bf16.mxu0 0
  %160 = vmatpush1.bf16.msra.mxu0 0
  %161 = vmatprep.subr.bf16.mxu0 0
  %162 = vmatpush1.bf16.msra.mxu0 0
  %163 = vmatprep.subr.bf16.mxu0 0
  %164 = vmatpush1.bf16.msra.mxu0 0
  %165 = vmatprep.subr.bf16.mxu0 0
  %166 = vmatpush1.bf16.msra.mxu0 0
  %167 = vmatprep.subr.bf16.mxu0 0
  %168 = vmatpush1.bf16.msra.mxu0 0
  %169 = vmatprep.subr.bf16.mxu0 0
  %170 = vmatpush1.bf16.msra.mxu0 0
  %171 = vmatprep.subr.bf16.mxu0 0
  %172 = vmatpush1.bf16.msra.mxu0 0
  %173 = vmatprep.subr.bf16.mxu0 %v157
  %174 = vmatpush1.bf16.msra.mxu0 %v154
  %175 = vmatprep.subr.bf16.mxu0 0
  %176 = vmatpush2.bf16.msra.mxu0 0
  %177 = vmatprep.subr.bf16.mxu0 0
  %178 = vmatpush2.bf16.msra.mxu0 0
  %179 = vmatprep.subr.bf16.mxu0 0
  %180 = vmatpush2.bf16.msra.mxu0 0
  %181 = vmatprep.subr.bf16.mxu0 0
  %182 = vmatpush2.bf16.msra.mxu0 0
  %183 = vmatprep.subr.bf16.mxu0 0
  %184 = vmatpush2.bf16.msra.mxu0 0
  %185 = vmatprep.subr.bf16.mxu0 0
  %186 = vmatpush2.bf16.msra.mxu0 0
  %187 = vmatprep.subr.bf16.mxu0 0
  %188 = vmatpush2.bf16.msra.mxu0 0
  %189 = vmatprep.subr.bf16.mxu0 0
  %190 = vmatpush2.bf16.msra.mxu0 0
  %191 = vmatprep.mubr.bf16.mxu0 0
  %192 = vmatmul.mubr.bf16.gmra.mxu0 %v151
  %v193 = vpop.f32.mrf.mxu0
  %v194 = vadd.f32 %v144, %v193
  %v195 = vpop.f32.mrf.mxu0
  %v196 = vadd.f32 %v146, %v195
  %v197 = vpop.f32.mrf.mxu0
  %v198 = vpop.f32.mrf.mxu0
  %199 = vdwg.mxu0
  %200 = vrot.lane.b32.xlu0 %v26, 8
  %v201 = vpop.permute.xlu0 %200
  %202 = vrot.lane.b32.xlu0 %v30, 8
  %v203 = vpop.permute.xlu0 %202
  %v204 = vsel %vm73, %v203, %v201
  %v208 = vsel %vm76, %v201, %v203
  %v210 = vld [vmem:[%s2] sm:$0x22]
  %v212 = vunpack.c.l.b16 %v210
  %v213 = vunpack.c.h.b16 %v210
  %v214 = vpack.c.b16 %v212, %v212
  %v215 = vpack.c.b16 %v213, %v213
  %v217 = vpack.i.b16 %v214, %v214
  %v219 = vlaneseq
  %v220 = vshrl.u32 %v219, 7
  %v221 = vsub.s32 1, %v220
  %v222 = vrot.slane %v217, %v221
  %v224 = vpack.i.b16 %v215, %v215
  %v226 = vlaneseq
  %v227 = vshrl.u32 %v226, 7
  %v228 = vsub.s32 1, %v227
  %v229 = vrot.slane %v224, %v228
  %v230 = vmul.bf16 %v208, %v222
  %v231 = vmul.bf16 %v204, %v229
  %s232 = scalar_lea.vmem %s1, 8
  %v233 = vld [vmem:[%s232] sm:$0xf]
  %v235 = vsel %vm76, %v233, 0
  %v238 = vsel %vm102, %v230, 0
  %v241 = vsel %vm102, %v231, 0
  %243 = vmatprep.subr.bf16.mxu0 0
  %244 = vmatpush1.bf16.msra.mxu0 0
  %245 = vmatprep.subr.bf16.mxu0 0
  %246 = vmatpush1.bf16.msra.mxu0 0
  %247 = vmatprep.subr.bf16.mxu0 0
  %248 = vmatpush1.bf16.msra.mxu0 0
  %249 = vmatprep.subr.bf16.mxu0 0
  %250 = vmatpush1.bf16.msra.mxu0 0
  %251 = vmatprep.subr.bf16.mxu0 0
  %252 = vmatpush1.bf16.msra.mxu0 0
  %253 = vmatprep.subr.bf16.mxu0 0
  %254 = vmatpush1.bf16.msra.mxu0 0
  %255 = vmatprep.subr.bf16.mxu0 0
  %256 = vmatpush1.bf16.msra.mxu0 0
  %257 = vmatprep.subr.bf16.mxu0 %v241
  %258 = vmatpush1.bf16.msra.mxu0 %v238
  %259 = vmatprep.subr.bf16.mxu0 0
  %260 = vmatpush2.bf16.msra.mxu0 0
  %261 = vmatprep.subr.bf16.mxu0 0
  %262 = vmatpush2.bf16.msra.mxu0 0
  %263 = vmatprep.subr.bf16.mxu0 0
  %264 = vmatpush2.bf16.msra.mxu0 0
  %265 = vmatprep.subr.bf16.mxu0 0
  %266 = vmatpush2.bf16.msra.mxu0 0
  %267 = vmatprep.subr.bf16.mxu0 0
  %268 = vmatpush2.bf16.msra.mxu0 0
  %269 = vmatprep.subr.bf16.mxu0 0
  %270 = vmatpush2.bf16.msra.mxu0 0
  %271 = vmatprep.subr.bf16.mxu0 0
  %272 = vmatpush2.bf16.msra.mxu0 0
  %273 = vmatprep.subr.bf16.mxu0 0
  %274 = vmatpush2.bf16.msra.mxu0 0
  %275 = vmatprep.mubr.bf16.mxu0 0
  %276 = vmatmul.mubr.bf16.gmra.mxu0 %v235
  %v277 = vpop.f32.mrf.mxu0
  %v278 = vadd.f32 0.0, %v277
  %v279 = vpop.f32.mrf.mxu0
  %v280 = vadd.f32 0.0, %v279
  %v281 = vpop.f32.mrf.mxu0
  %v282 = vpop.f32.mrf.mxu0
  %283 = vdwg.mxu0
  %v284 = vadd.f32 %v194, %v278
  %v285 = vadd.f32 %v196, %v280
  %v287 = vunpack.c.h.b16 %v19
  %v288 = vpack.c.b16 %v287, %v287
  %289 = vrot.lane.b32.xlu0 %v288, 1
  %v290 = vpop.permute.xlu0 %289
  %v291 = vunpack.c.l.b16 %v19
  %v292 = vpack.c.b16 %v291, %v291
  %293 = vrot.lane.b32.xlu0 %v292, 1
  %v294 = vpop.permute.xlu0 %293
  %vm295 = vcmask 7168
  %v296 = vsel %vm295, %v294, %v290
  %vm298 = vcmask 7168
  %v301 = vsel %vm298, %v290, %v294
  %v303 = vshrl.u32 %v214, 16
  %v304 = vpack.i.b16 %v303, %v303
  %v306 = vlaneseq
  %v307 = vshrl.u32 %v306, 7
  %v308 = vsub.s32 1, %v307
  %v309 = vrot.slane %v304, %v308
  %v310 = vshrl.u32 %v215, 16
  %v311 = vpack.i.b16 %v310, %v310
  %v313 = vlaneseq
  %v314 = vshrl.u32 %v313, 7
  %v315 = vsub.s32 1, %v314
  %v316 = vrot.slane %v311, %v315
  %v317 = vmul.bf16 %v301, %v309
  %v318 = vmul.bf16 %v296, %v316
  %s319 = scalar_lea.vmem %s1, 12
  %v320 = vld [vmem:[%s319] sm:$0xf]
  %v322 = vsel %vm76, %v320, 0
  %v325 = vsel %vm102, %v317, 0
  %v328 = vsel %vm102, %v318, 0
  %330 = vmatprep.subr.bf16.mxu0 0
  %331 = vmatpush1.bf16.msra.mxu0 0
  %332 = vmatprep.subr.bf16.mxu0 0
  %333 = vmatpush1.bf16.msra.mxu0 0
  %334 = vmatprep.subr.bf16.mxu0 0
  %335 = vmatpush1.bf16.msra.mxu0 0
  %336 = vmatprep.subr.bf16.mxu0 0
  %337 = vmatpush1.bf16.msra.mxu0 0
  %338 = vmatprep.subr.bf16.mxu0 0
  %339 = vmatpush1.bf16.msra.mxu0 0
  %340 = vmatprep.subr.bf16.mxu0 0
  %341 = vmatpush1.bf16.msra.mxu0 0
  %342 = vmatprep.subr.bf16.mxu0 0
  %343 = vmatpush1.bf16.msra.mxu0 0
  %344 = vmatprep.subr.bf16.mxu0 %v328
  %345 = vmatpush1.bf16.msra.mxu0 %v325
  %346 = vmatprep.subr.bf16.mxu0 0
  %347 = vmatpush2.bf16.msra.mxu0 0
  %348 = vmatprep.subr.bf16.mxu0 0
  %349 = vmatpush2.bf16.msra.mxu0 0
  %350 = vmatprep.subr.bf16.mxu0 0
  %351 = vmatpush2.bf16.msra.mxu0 0
  %352 = vmatprep.subr.bf16.mxu0 0
  %353 = vmatpush2.bf16.msra.mxu0 0
  %354 = vmatprep.subr.bf16.mxu0 0
  %355 = vmatpush2.bf16.msra.mxu0 0
  %356 = vmatprep.subr.bf16.mxu0 0
  %357 = vmatpush2.bf16.msra.mxu0 0
  %358 = vmatprep.subr.bf16.mxu0 0
  %359 = vmatpush2.bf16.msra.mxu0 0
  %360 = vmatprep.subr.bf16.mxu0 0
  %361 = vmatpush2.bf16.msra.mxu0 0
  %362 = vmatprep.mubr.bf16.mxu0 0
  %363 = vmatmul.mubr.bf16.gmra.mxu0 %v322
  %v364 = vpop.f32.mrf.mxu0
  %v365 = vadd.f32 0.0, %v364
  %v366 = vpop.f32.mrf.mxu0
  %v367 = vadd.f32 0.0, %v366
  %v368 = vpop.f32.mrf.mxu0
  %v369 = vpop.f32.mrf.mxu0
  %370 = vdwg.mxu0
  %v371 = vadd.f32 %v284, %v365
  %v372 = vadd.f32 %v285, %v367
  %v373 = vld [vmem:[%s2] sm:$0x44]
  %v375 = vunpack.c.l.b16 %v373
  %v376 = vunpack.c.h.b16 %v373
  %v377 = vpack.c.b16 %v375, %v375
  %v378 = vpack.c.b16 %v376, %v376
  %v380 = vpack.i.b16 %v377, %v377
  %v382 = vlaneseq
  %v383 = vshrl.u32 %v382, 7
  %v384 = vsub.s32 2, %v383
  %v385 = vrot.slane %v380, %v384
  %v387 = vpack.i.b16 %v378, %v378
  %v389 = vlaneseq
  %v390 = vshrl.u32 %v389, 7
  %v391 = vsub.s32 2, %v390
  %v392 = vrot.slane %v387, %v391
  %v395 = vunpack.c.l.b16 %v385
  %v396 = vunpack.c.l.b16 %v392
  %v397 = vpack.c.b16 %v396, %v395
  %v399 = vmul.bf16 %v17, %v397
  %s400 = scalar_lea.vmem %s1, 16
  %v401 = vld [vmem:[%s400] sm:$0xf]
  %v403 = vunpack.c.l.b16 %v399
  %v404 = vunpack.c.h.b16 %v399
  %v405 = vpack.c.b16 %v403, %v403
  %v406 = vpack.c.b16 %v404, %v404
  %v408 = vsel %vm76, %v401, 0
  %v411 = vsel %vm102, %v405, 0
  %v414 = vsel %vm102, %v406, 0
  %416 = vmatprep.subr.bf16.mxu0 0
  %417 = vmatpush1.bf16.msra.mxu0 0
  %418 = vmatprep.subr.bf16.mxu0 0
  %419 = vmatpush1.bf16.msra.mxu0 0
  %420 = vmatprep.subr.bf16.mxu0 0
  %421 = vmatpush1.bf16.msra.mxu0 0
  %422 = vmatprep.subr.bf16.mxu0 0
  %423 = vmatpush1.bf16.msra.mxu0 0
  %424 = vmatprep.subr.bf16.mxu0 0
  %425 = vmatpush1.bf16.msra.mxu0 0
  %426 = vmatprep.subr.bf16.mxu0 0
  %427 = vmatpush1.bf16.msra.mxu0 0
  %428 = vmatprep.subr.bf16.mxu0 0
  %429 = vmatpush1.bf16.msra.mxu0 0
  %430 = vmatprep.subr.bf16.mxu0 %v414
  %431 = vmatpush1.bf16.msra.mxu0 %v411
  %432 = vmatprep.subr.bf16.mxu0 0
  %433 = vmatpush2.bf16.msra.mxu0 0
  %434 = vmatprep.subr.bf16.mxu0 0
  %435 = vmatpush2.bf16.msra.mxu0 0
  %436 = vmatprep.subr.bf16.mxu0 0
  %437 = vmatpush2.bf16.msra.mxu0 0
  %438 = vmatprep.subr.bf16.mxu0 0
  %439 = vmatpush2.bf16.msra.mxu0 0
  %440 = vmatprep.subr.bf16.mxu0 0
  %441 = vmatpush2.bf16.msra.mxu0 0
  %442 = vmatprep.subr.bf16.mxu0 0
  %443 = vmatpush2.bf16.msra.mxu0 0
  %444 = vmatprep.subr.bf16.mxu0 0
  %445 = vmatpush2.bf16.msra.mxu0 0
  %446 = vmatprep.subr.bf16.mxu0 0
  %447 = vmatpush2.bf16.msra.mxu0 0
  %448 = vmatprep.mubr.bf16.mxu0 0
  %449 = vmatmul.mubr.bf16.gmra.mxu0 %v408
  %v450 = vpop.f32.mrf.mxu0
  %v451 = vadd.f32 0.0, %v450
  %v452 = vpop.f32.mrf.mxu0
  %v453 = vadd.f32 0.0, %v452
  %v454 = vpop.f32.mrf.mxu0
  %v455 = vpop.f32.mrf.mxu0
  %456 = vdwg.mxu0
  %v457 = vadd.f32 %v371, %v451
  %v458 = vadd.f32 %v372, %v453
  %v459 = vshrl.u32 %v377, 16
  %v460 = vpack.i.b16 %v459, %v459
  %v462 = vlaneseq
  %v463 = vshrl.u32 %v462, 7
  %v464 = vsub.s32 2, %v463
  %v465 = vrot.slane %v460, %v464
  %v466 = vshrl.u32 %v378, 16
  %v467 = vpack.i.b16 %v466, %v466
  %v469 = vlaneseq
  %v470 = vshrl.u32 %v469, 7
  %v471 = vsub.s32 2, %v470
  %v472 = vrot.slane %v467, %v471
  %v475 = vunpack.c.l.b16 %v465
  %v476 = vunpack.c.l.b16 %v472
  %v477 = vpack.c.b16 %v476, %v475
  %v479 = vmul.bf16 %v19, %v477
  %s480 = scalar_lea.vmem %s1, 20
  %v481 = vld [vmem:[%s480] sm:$0xf]
  %v483 = vunpack.c.l.b16 %v479
  %v484 = vunpack.c.h.b16 %v479
  %v485 = vpack.c.b16 %v483, %v483
  %v486 = vpack.c.b16 %v484, %v484
  %v488 = vsel %vm76, %v481, 0
  %v491 = vsel %vm102, %v485, 0
  %v494 = vsel %vm102, %v486, 0
  %496 = vmatprep.subr.bf16.mxu0 0
  %497 = vmatpush1.bf16.msra.mxu0 0
  %498 = vmatprep.subr.bf16.mxu0 0
  %499 = vmatpush1.bf16.msra.mxu0 0
  %500 = vmatprep.subr.bf16.mxu0 0
  %501 = vmatpush1.bf16.msra.mxu0 0
  %502 = vmatprep.subr.bf16.mxu0 0
  %503 = vmatpush1.bf16.msra.mxu0 0
  %504 = vmatprep.subr.bf16.mxu0 0
  %505 = vmatpush1.bf16.msra.mxu0 0
  %506 = vmatprep.subr.bf16.mxu0 0
  %507 = vmatpush1.bf16.msra.mxu0 0
  %508 = vmatprep.subr.bf16.mxu0 0
  %509 = vmatpush1.bf16.msra.mxu0 0
  %510 = vmatprep.subr.bf16.mxu0 %v494
  %511 = vmatpush1.bf16.msra.mxu0 %v491
  %512 = vmatprep.subr.bf16.mxu0 0
  %513 = vmatpush2.bf16.msra.mxu0 0
  %514 = vmatprep.subr.bf16.mxu0 0
  %515 = vmatpush2.bf16.msra.mxu0 0
  %516 = vmatprep.subr.bf16.mxu0 0
  %517 = vmatpush2.bf16.msra.mxu0 0
  %518 = vmatprep.subr.bf16.mxu0 0
  %519 = vmatpush2.bf16.msra.mxu0 0
  %520 = vmatprep.subr.bf16.mxu0 0
  %521 = vmatpush2.bf16.msra.mxu0 0
  %522 = vmatprep.subr.bf16.mxu0 0
  %523 = vmatpush2.bf16.msra.mxu0 0
  %524 = vmatprep.subr.bf16.mxu0 0
  %525 = vmatpush2.bf16.msra.mxu0 0
  %526 = vmatprep.subr.bf16.mxu0 0
  %527 = vmatpush2.bf16.msra.mxu0 0
  %528 = vmatprep.mubr.bf16.mxu0 0
  %529 = vmatmul.mubr.bf16.gmra.mxu0 %v488
  %v530 = vpop.f32.mrf.mxu0
  %v531 = vadd.f32 0.0, %v530
  %v532 = vpop.f32.mrf.mxu0
  %v533 = vadd.f32 0.0, %v532
  %v534 = vpop.f32.mrf.mxu0
  %v535 = vpop.f32.mrf.mxu0
  %536 = vdwg.mxu0
  %v537 = vadd.f32 %v457, %v531
  %v538 = vadd.f32 %v458, %v533
  %539 = vrot.lane.b32.xlu0 %v26, 1
  %v540 = vpop.permute.xlu0 %539
  %541 = vrot.lane.b32.xlu0 %v30, 1
  %v542 = vpop.permute.xlu0 %541
  %v543 = vsel %vm295, %v542, %v540
  %v547 = vsel %vm298, %v540, %v542
  %v549 = vld [vmem:[%s2] sm:$0x88]
  %v551 = vunpack.c.l.b16 %v549
  %v552 = vunpack.c.h.b16 %v549
  %v553 = vpack.c.b16 %v551, %v551
  %v554 = vpack.c.b16 %v552, %v552
  %v556 = vpack.i.b16 %v553, %v553
  %v558 = vlaneseq
  %v559 = vshrl.u32 %v558, 7
  %v560 = vsub.s32 3, %v559
  %v561 = vrot.slane %v556, %v560
  %v563 = vpack.i.b16 %v554, %v554
  %v565 = vlaneseq
  %v566 = vshrl.u32 %v565, 7
  %v567 = vsub.s32 3, %v566
  %v568 = vrot.slane %v563, %v567
  %v569 = vmul.bf16 %v547, %v561
  %v570 = vmul.bf16 %v543, %v568
  %s571 = scalar_lea.vmem %s1, 24
  %v572 = vld [vmem:[%s571] sm:$0xf]
  %v574 = vsel %vm76, %v572, 0
  %v577 = vsel %vm102, %v569, 0
  %v580 = vsel %vm102, %v570, 0
  %582 = vmatprep.subr.bf16.mxu0 0
  %583 = vmatpush1.bf16.msra.mxu0 0
  %584 = vmatprep.subr.bf16.mxu0 0
  %585 = vmatpush1.bf16.msra.mxu0 0
  %586 = vmatprep.subr.bf16.mxu0 0
  %587 = vmatpush1.bf16.msra.mxu0 0
  %588 = vmatprep.subr.bf16.mxu0 0
  %589 = vmatpush1.bf16.msra.mxu0 0
  %590 = vmatprep.subr.bf16.mxu0 0
  %591 = vmatpush1.bf16.msra.mxu0 0
  %592 = vmatprep.subr.bf16.mxu0 0
  %593 = vmatpush1.bf16.msra.mxu0 0
  %594 = vmatprep.subr.bf16.mxu0 0
  %595 = vmatpush1.bf16.msra.mxu0 0
  %596 = vmatprep.subr.bf16.mxu0 %v580
  %597 = vmatpush1.bf16.msra.mxu0 %v577
  %598 = vmatprep.subr.bf16.mxu0 0
  %599 = vmatpush2.bf16.msra.mxu0 0
  %600 = vmatprep.subr.bf16.mxu0 0
  %601 = vmatpush2.bf16.msra.mxu0 0
  %602 = vmatprep.subr.bf16.mxu0 0
  %603 = vmatpush2.bf16.msra.mxu0 0
  %604 = vmatprep.subr.bf16.mxu0 0
  %605 = vmatpush2.bf16.msra.mxu0 0
  %606 = vmatprep.subr.bf16.mxu0 0
  %607 = vmatpush2.bf16.msra.mxu0 0
  %608 = vmatprep.subr.bf16.mxu0 0
  %609 = vmatpush2.bf16.msra.mxu0 0
  %610 = vmatprep.subr.bf16.mxu0 0
  %611 = vmatpush2.bf16.msra.mxu0 0
  %612 = vmatprep.subr.bf16.mxu0 0
  %613 = vmatpush2.bf16.msra.mxu0 0
  %614 = vmatprep.mubr.bf16.mxu0 0
  %615 = vmatmul.mubr.bf16.gmra.mxu0 %v574
  %v616 = vpop.f32.mrf.mxu0
  %v617 = vadd.f32 0.0, %v616
  %v618 = vpop.f32.mrf.mxu0
  %v619 = vadd.f32 0.0, %v618
  %v620 = vpop.f32.mrf.mxu0
  %v621 = vpop.f32.mrf.mxu0
  %622 = vdwg.mxu0
  %v623 = vadd.f32 %v537, %v617
  %v624 = vadd.f32 %v538, %v619
  %v625 = vshrl.u32 %v553, 16
  %v626 = vpack.i.b16 %v625, %v625
  %v628 = vlaneseq
  %v629 = vshrl.u32 %v628, 7
  %v630 = vsub.s32 3, %v629
  %v631 = vrot.slane %v626, %v630
  %v632 = vshrl.u32 %v554, 16
  %v633 = vpack.i.b16 %v632, %v632
  %v635 = vlaneseq
  %v636 = vshrl.u32 %v635, 7
  %v637 = vsub.s32 3, %v636
  %v638 = vrot.slane %v633, %v637
  %v641 = vunpack.c.l.b16 %v631
  %v642 = vunpack.c.l.b16 %v638
  %v643 = vpack.c.b16 %v642, %v641
  %v645 = vmul.bf16 %v21, %v643
  %s646 = scalar_lea.vmem %s1, 28
  %v647 = vld [vmem:[%s646] sm:$0xf]
  %v649 = vunpack.c.l.b16 %v645
  %v650 = vunpack.c.h.b16 %v645
  %v651 = vpack.c.b16 %v649, %v649
  %v652 = vpack.c.b16 %v650, %v650
  %v654 = vsel %vm76, %v647, 0
  %v657 = vsel %vm102, %v651, 0
  %v660 = vsel %vm102, %v652, 0
  %662 = vmatprep.subr.bf16.mxu0 0
  %663 = vmatpush1.bf16.msra.mxu0 0
  %664 = vmatprep.subr.bf16.mxu0 0
  %665 = vmatpush1.bf16.msra.mxu0 0
  %666 = vmatprep.subr.bf16.mxu0 0
  %667 = vmatpush1.bf16.msra.mxu0 0
  %668 = vmatprep.subr.bf16.mxu0 0
  %669 = vmatpush1.bf16.msra.mxu0 0
  %670 = vmatprep.subr.bf16.mxu0 0
  %671 = vmatpush1.bf16.msra.mxu0 0
  %672 = vmatprep.subr.bf16.mxu0 0
  %673 = vmatpush1.bf16.msra.mxu0 0
  %674 = vmatprep.subr.bf16.mxu0 0
  %675 = vmatpush1.bf16.msra.mxu0 0
  %676 = vmatprep.subr.bf16.mxu0 %v660
  %677 = vmatpush1.bf16.msra.mxu0 %v657
  %678 = vmatprep.subr.bf16.mxu0 0
  %679 = vmatpush2.bf16.msra.mxu0 0
  %680 = vmatprep.subr.bf16.mxu0 0
  %681 = vmatpush2.bf16.msra.mxu0 0
  %682 = vmatprep.subr.bf16.mxu0 0
  %683 = vmatpush2.bf16.msra.mxu0 0
  %684 = vmatprep.subr.bf16.mxu0 0
  %685 = vmatpush2.bf16.msra.mxu0 0
  %686 = vmatprep.subr.bf16.mxu0 0
  %687 = vmatpush2.bf16.msra.mxu0 0
  %688 = vmatprep.subr.bf16.mxu0 0
  %689 = vmatpush2.bf16.msra.mxu0 0
  %690 = vmatprep.subr.bf16.mxu0 0
  %691 = vmatpush2.bf16.msra.mxu0 0
  %692 = vmatprep.subr.bf16.mxu0 0
  %693 = vmatpush2.bf16.msra.mxu0 0
  %694 = vmatprep.mubr.bf16.mxu0 0
  %695 = vmatmul.mubr.bf16.gmra.mxu0 %v654
  %v696 = vpop.f32.mrf.mxu0
  %v697 = vadd.f32 0.0, %v696
  %v698 = vpop.f32.mrf.mxu0
  %v699 = vadd.f32 0.0, %v698
  %v700 = vpop.f32.mrf.mxu0
  %v701 = vpop.f32.mrf.mxu0
  %702 = vdwg.mxu0
  %v703 = vadd.f32 %v623, %v697
  %v704 = vadd.f32 %v624, %v699
  %v705 = vld [vmem:[%s2 + $0x8] sm:$0x11]
  %v707 = vunpack.c.l.b16 %v705
  %v708 = vunpack.c.h.b16 %v705
  %v709 = vpack.c.b16 %v707, %v707
  %v710 = vpack.c.b16 %v708, %v708
  %v712 = vpack.i.b16 %v709, %v709
  %v714 = vlaneseq
  %v715 = vshrl.u32 %v714, 7
  %v716 = vsub.s32 0, %v715
  %v717 = vrot.slane %v712, %v716
  %v719 = vpack.i.b16 %v710, %v710
  %v721 = vlaneseq
  %v722 = vshrl.u32 %v721, 7
  %v723 = vsub.s32 0, %v722
  %v724 = vrot.slane %v719, %v723
  %v727 = vunpack.c.l.b16 %v717
  %v728 = vunpack.c.l.b16 %v724
  %v729 = vpack.c.b16 %v728, %v727
  %v731 = vmul.bf16 %v23, %v729
  %s732 = scalar_lea.vmem %s1, 32
  %v733 = vld [vmem:[%s732] sm:$0xf]
  %v735 = vunpack.c.l.b16 %v731
  %v736 = vunpack.c.h.b16 %v731
  %v737 = vpack.c.b16 %v735, %v735
  %v738 = vpack.c.b16 %v736, %v736
  %v740 = vsel %vm76, %v733, 0
  %v743 = vsel %vm102, %v737, 0
  %v746 = vsel %vm102, %v738, 0
  %748 = vmatprep.subr.bf16.mxu0 0
  %749 = vmatpush1.bf16.msra.mxu0 0
  %750 = vmatprep.subr.bf16.mxu0 0
  %751 = vmatpush1.bf16.msra.mxu0 0
  %752 = vmatprep.subr.bf16.mxu0 0
  %753 = vmatpush1.bf16.msra.mxu0 0
  %754 = vmatprep.subr.bf16.mxu0 0
  %755 = vmatpush1.bf16.msra.mxu0 0
  %756 = vmatprep.subr.bf16.mxu0 0
  %757 = vmatpush1.bf16.msra.mxu0 0
  %758 = vmatprep.subr.bf16.mxu0 0
  %759 = vmatpush1.bf16.msra.mxu0 0
  %760 = vmatprep.subr.bf16.mxu0 0
  %761 = vmatpush1.bf16.msra.mxu0 0
  %762 = vmatprep.subr.bf16.mxu0 %v746
  %763 = vmatpush1.bf16.msra.mxu0 %v743
  %764 = vmatprep.subr.bf16.mxu0 0
  %765 = vmatpush2.bf16.msra.mxu0 0
  %766 = vmatprep.subr.bf16.mxu0 0
  %767 = vmatpush2.bf16.msra.mxu0 0
  %768 = vmatprep.subr.bf16.mxu0 0
  %769 = vmatpush2.bf16.msra.mxu0 0
  %770 = vmatprep.subr.bf16.mxu0 0
  %771 = vmatpush2.bf16.msra.mxu0 0
  %772 = vmatprep.subr.bf16.mxu0 0
  %773 = vmatpush2.bf16.msra.mxu0 0
  %774 = vmatprep.subr.bf16.mxu0 0
  %775 = vmatpush2.bf16.msra.mxu0 0
  %776 = vmatprep.subr.bf16.mxu0 0
  %777 = vmatpush2.bf16.msra.mxu0 0
  %778 = vmatprep.subr.bf16.mxu0 0
  %779 = vmatpush2.bf16.msra.mxu0 0
  %780 = vmatprep.mubr.bf16.mxu0 0
  %781 = vmatmul.mubr.bf16.gmra.mxu0 %v740
  %v782 = vpop.f32.mrf.mxu0
  %v783 = vadd.f32 0.0, %v782
  %v784 = vpop.f32.mrf.mxu0
  %v785 = vadd.f32 0.0, %v784
  %v786 = vpop.f32.mrf.mxu0
  %v787 = vpop.f32.mrf.mxu0
  %788 = vdwg.mxu0
  %v789 = vadd.f32 %v703, %v783
  %v790 = vadd.f32 %v704, %v785
  %791 = vst [vmem:[%s3] sm:$0xff] %v789
  %792 = vst [vmem:[%s3 + $0x8] sm:$0xff] %v790
  %v793 = vadd.f32 %v789, %v790
  %794 = vadd.xlane.f32.xlu0 %v793
  %v795 = vpop.xlane.xlu0 %794
  %796 = vst.msk [vmem:[%s4] sm:$0xff] %vm298, %v795
  %v797 = vmul.f32 %v789, %v789
  %v798 = vmul.f32 %v790, %v790
  %v799 = vadd.f32 %v797, %v798
  %800 = vadd.xlane.f32.xlu0 %v799
  %v801 = vpop.xlane.xlu0 %800
  %vm802 = vcmask 15368
  %803 = vst.msk [vmem:[%s4] sm:$0xff] %vm802, %v801
  // Predicated region
  $region14: #{basic_block_forward.3} parent=0 // pred_check
    _
  $region15: #{basic_block_forward.3} parent=0 // pred_check_branch
    %805 = sbr.rel (0) target = $region17
  $region16: #{basic_block_forward.3} parent=0 // pred_region
    _
  $region17: #{basic_block_forward.3} parent=0 // pred_fallthru
    _
  // Predicated region
  $region18: #{basic_block_forward.3} parent=0 // pred_check
    _
  $region19: #{basic_block_forward.3} parent=0 // pred_check_branch
    %807 = sbr.rel (0) target = $region21
  $region20: #{basic_block_forward.3} parent=0 // pred_region
    _
  $region21: #{basic_block_forward.3} parent=0 // pred_fallthru
    _
  // Predicated region
  $region22: #{basic_block_forward.3} parent=0 // pred_check
    _
  $region23: #{basic_block_forward.3} parent=0 // pred_check_branch
    %809 = sbr.rel (0) target = $region25
  $region24: #{basic_block_forward.3} parent=0 // pred_region
    _
  $region25: #{basic_block_forward.3} parent=0 // pred_fallthru
    _
  // Predicated region
  $region26: #{basic_block_forward.3} parent=0 // pred_check
    _
  $region27: #{basic_block_forward.3} parent=0 // pred_check_branch
    %811 = sbr.rel (0) target = $region29
  $region28: #{basic_block_forward.3} parent=0 // pred_region
    _
  $region29: #{basic_block_forward.3} parent=0 // pred_fallthru
    _

// kernel: basic_block_forward.4
$region0: #{basic_block_forward.4}
  #allocation0 [shape = 'u32[]', space=smem, size = 0x4, offset = 0x4, fixed_abs, tag = 'smem constant byte address 0x4 - core index']
  #allocation1 [shape = 'u32[144,128]{1,0:T(1,128)}', space=vmem, size = 0x12000, scoped, tag = 'internal scratch']
  %s0 = inlined_call_operand.vmem [shape: f32[1,8,256], index: 0, kind: input, shape index: {}]
  %s1 = inlined_call_operand.vmem [shape: f32[8,1], index: 1, kind: input, shape index: {}]
  %s2 = inlined_call_operand.vmem [shape: f32[8,1], index: 2, kind: input, shape index: {}]
  %s3 = inlined_call_operand.vmem [shape: bf16[9,8,8], index: 3, kind: input, shape index: {}]
  %s4 = inlined_call_operand.vmem [shape: bf16[9,256], index: 4, kind: input, shape index: {}]
  %s5 = inlined_call_operand.vmem [shape: f32[1,8,256], index: 5, kind: output, shape index: {0}]
  %s6 = inlined_call_operand.vmem [shape: f32[1,8,2], index: 6, kind: output, shape index: {1}]
  %7 = xla_tuple %s5, %s6
  %s8 = sld [smem:[#allocation0]]
  $region38: #{basic_block_forward.4} parent=0
    _
  %s10 = ssub.s32 1, %s8
  %s11 = scalar_select 0, %s10, %s8
  // Predicated region
  $region2: #{basic_block_forward.4} parent=0 // pred_check
    _
  $region3: #{basic_block_forward.4} parent=0 // pred_check_branch
    %13 = sbr.rel (0) target = $region5
  $region4: #{basic_block_forward.4} parent=0 // pred_region
    _
  $region5: #{basic_block_forward.4} parent=0 // pred_fallthru
    _
  // Predicated region
  $region6: #{basic_block_forward.4} parent=0 // pred_check
    _
  $region7: #{basic_block_forward.4} parent=0 // pred_check_branch
    %15 = sbr.rel (0) target = $region9
  $region8: #{basic_block_forward.4} parent=0 // pred_region
    _
  $region9: #{basic_block_forward.4} parent=0 // pred_fallthru
    _
  // Predicated region
  $region10: #{basic_block_forward.4} parent=0 // pred_check
    _
  $region11: #{basic_block_forward.4} parent=0 // pred_check_branch
    %17 = sbr.rel (0) target = $region13
  $region12: #{basic_block_forward.4} parent=0 // pred_region
    _
  $region13: #{basic_block_forward.4} parent=0 // pred_fallthru
    _
  // Predicated region
  $region14: #{basic_block_forward.4} parent=0 // pred_check
    _
  $region15: #{basic_block_forward.4} parent=0 // pred_check_branch
    %19 = sbr.rel (0) target = $region17
  $region16: #{basic_block_forward.4} parent=0 // pred_region
    _
  $region17: #{basic_block_forward.4} parent=0 // pred_fallthru
    _
  // Predicated region
  $region18: #{basic_block_forward.4} parent=0 // pred_check
    _
  $region19: #{basic_block_forward.4} parent=0 // pred_check_branch
    %21 = sbr.rel (0) target = $region21
  $region20: #{basic_block_forward.4} parent=0 // pred_region
    _
  $region21: #{basic_block_forward.4} parent=0 // pred_fallthru
    _
  %v23 = vld [vmem:[%s0] sm:$0xff]
  %v24 = vld [vmem:[%s0 + $0x8] sm:$0xff]
  %v25 = vld [vmem:[%s1] sm:$0xff]
  %27 = vset.pattern.permute.xlu0 0
  %28 = vperm.xlu0 %27, %v25
  %v29 = vpop.permute.xlu0 %28
  %v31 = vmul.f32 %v23, %v29
  %v32 = vmul.f32 %v24, %v29
  %v33 = vld [vmem:[%s2] sm:$0xff]
  %35 = vset.pattern.permute.xlu0 0
  %36 = vperm.xlu0 %35, %v33
  %v37 = vpop.permute.xlu0 %36
  %v39 = vadd.f32 %v31, %v37
  %v40 = vadd.f32 %v32, %v37
  %v41 = vmax.f32 %v39, 0.0
  %v42 = vmax.f32 %v40, 0.0
  %v43 = vpack.c.bf16 %v41, %v41
  %v44 = vpack.c.bf16 %v42, %v42
  %46 = vrot.lane.b32.xlu0 %v44, 9
  %v47 = vpop.permute.xlu0 %46
  %49 = vrot.lane.b32.xlu0 %v43, 9
  %v50 = vpop.permute.xlu0 %49
  %vm51 = vcmask 72704
  %v52 = vsel %vm51, %v50, %v47
  %vm54 = vcmask 72704
  %v57 = vsel %vm54, %v47, %v50
  %v59 = vld [vmem:[%s4] sm:$0x11]
  %v61 = vunpack.c.l.b16 %v59
  %v62 = vunpack.c.h.b16 %v59
  %v63 = vpack.c.b16 %v61, %v61
  %v64 = vpack.c.b16 %v62, %v62
  %v66 = vpack.i.b16 %v63, %v63
  %v68 = vlaneseq
  %v69 = vshrl.u32 %v68, 7
  %v70 = vsub.s32 0, %v69
  %v71 = vrot.slane %v66, %v70
  %v73 = vpack.i.b16 %v64, %v64
  %v75 = vlaneseq
  %v76 = vshrl.u32 %v75, 7
  %v77 = vsub.s32 0, %v76
  %v78 = vrot.slane %v73, %v77
  %v79 = vmul.bf16 %v57, %v71
  %v80 = vmul.bf16 %v52, %v78
  %v81 = vld [vmem:[%s3] sm:$0xf]
  %82 = vrot.lane.b32.xlu0 %v44, 8
  %v83 = vpop.permute.xlu0 %82
  %84 = vrot.lane.b32.xlu0 %v43, 8
  %v85 = vpop.permute.xlu0 %84
  %vm86 = vcmask 64512
  %v87 = vsel %vm86, %v85, %v83
  %vm89 = vcmask 64512
  %v92 = vsel %vm89, %v83, %v85
  %v94 = vshrl.u32 %v63, 16
  %v95 = vpack.i.b16 %v94, %v94
  %v97 = vlaneseq
  %v98 = vshrl.u32 %v97, 7
  %v99 = vsub.s32 0, %v98
  %v100 = vrot.slane %v95, %v99
  %v101 = vshrl.u32 %v64, 16
  %v102 = vpack.i.b16 %v101, %v101
  %v104 = vlaneseq
  %v105 = vshrl.u32 %v104, 7
  %v106 = vsub.s32 0, %v105
  %v107 = vrot.slane %v102, %v106
  %v108 = vmul.bf16 %v92, %v100
  %v109 = vmul.bf16 %v87, %v107
  %s110 = scalar_lea.vmem %s3, 4
  %v111 = vld [vmem:[%s110] sm:$0xf]
  %v113 = vsel %vm89, %v111, 0
  %vm115 = vcmask 1043456
  %v117 = vsel %vm115, %v108, 0
  %v120 = vsel %vm115, %v109, 0
  %122 = vmatprep.subr.bf16.mxu0 0
  %123 = vmatpush1.bf16.msra.mxu0 0
  %124 = vmatprep.subr.bf16.mxu0 0
  %125 = vmatpush1.bf16.msra.mxu0 0
  %126 = vmatprep.subr.bf16.mxu0 0
  %127 = vmatpush1.bf16.msra.mxu0 0
  %128 = vmatprep.subr.bf16.mxu0 0
  %129 = vmatpush1.bf16.msra.mxu0 0
  %130 = vmatprep.subr.bf16.mxu0 0
  %131 = vmatpush1.bf16.msra.mxu0 0
  %132 = vmatprep.subr.bf16.mxu0 0
  %133 = vmatpush1.bf16.msra.mxu0 0
  %134 = vmatprep.subr.bf16.mxu0 0
  %135 = vmatpush1.bf16.msra.mxu0 0
  %136 = vmatprep.subr.bf16.mxu0 %v120
  %137 = vmatpush1.bf16.msra.mxu0 %v117
  %138 = vmatprep.subr.bf16.mxu0 0
  %139 = vmatpush2.bf16.msra.mxu0 0
  %140 = vmatprep.subr.bf16.mxu0 0
  %141 = vmatpush2.bf16.msra.mxu0 0
  %142 = vmatprep.subr.bf16.mxu0 0
  %143 = vmatpush2.bf16.msra.mxu0 0
  %144 = vmatprep.subr.bf16.mxu0 0
  %145 = vmatpush2.bf16.msra.mxu0 0
  %146 = vmatprep.subr.bf16.mxu0 0
  %147 = vmatpush2.bf16.msra.mxu0 0
  %148 = vmatprep.subr.bf16.mxu0 0
  %149 = vmatpush2.bf16.msra.mxu0 0
  %150 = vmatprep.subr.bf16.mxu0 0
  %151 = vmatpush2.bf16.msra.mxu0 0
  %152 = vmatprep.subr.bf16.mxu0 0
  %153 = vmatpush2.bf16.msra.mxu0 0
  %154 = vmatprep.mubr.bf16.mxu0 0
  %155 = vmatmul.mubr.bf16.gmra.mxu0 %v113
  %v156 = vpop.f32.mrf.mxu0
  %v157 = vadd.f32 0.0, %v156
  %v158 = vpop.f32.mrf.mxu0
  %v159 = vadd.f32 0.0, %v158
  %v160 = vpop.f32.mrf.mxu0
  %v161 = vpop.f32.mrf.mxu0
  %162 = vdwg.mxu0
  %v164 = vsel %vm89, %v81, 0
  %v167 = vsel %vm115, %v79, 0
  %v170 = vsel %vm115, %v80, 0
  %172 = vmatprep.subr.bf16.mxu0 0
  %173 = vmatpush1.bf16.msra.mxu0 0
  %174 = vmatprep.subr.bf16.mxu0 0
  %175 = vmatpush1.bf16.msra.mxu0 0
  %176 = vmatprep.subr.bf16.mxu0 0
  %177 = vmatpush1.bf16.msra.mxu0 0
  %178 = vmatprep.subr.bf16.mxu0 0
  %179 = vmatpush1.bf16.msra.mxu0 0
  %180 = vmatprep.subr.bf16.mxu0 0
  %181 = vmatpush1.bf16.msra.mxu0 0
  %182 = vmatprep.subr.bf16.mxu0 0
  %183 = vmatpush1.bf16.msra.mxu0 0
  %184 = vmatprep.subr.bf16.mxu0 0
  %185 = vmatpush1.bf16.msra.mxu0 0
  %186 = vmatprep.subr.bf16.mxu0 %v170
  %187 = vmatpush1.bf16.msra.mxu0 %v167
  %188 = vmatprep.subr.bf16.mxu0 0
  %189 = vmatpush2.bf16.msra.mxu0 0
  %190 = vmatprep.subr.bf16.mxu0 0
  %191 = vmatpush2.bf16.msra.mxu0 0
  %192 = vmatprep.subr.bf16.mxu0 0
  %193 = vmatpush2.bf16.msra.mxu0 0
  %194 = vmatprep.subr.bf16.mxu0 0
  %195 = vmatpush2.bf16.msra.mxu0 0
  %196 = vmatprep.subr.bf16.mxu0 0
  %197 = vmatpush2.bf16.msra.mxu0 0
  %198 = vmatprep.subr.bf16.mxu0 0
  %199 = vmatpush2.bf16.msra.mxu0 0
  %200 = vmatprep.subr.bf16.mxu0 0
  %201 = vmatpush2.bf16.msra.mxu0 0
  %202 = vmatprep.subr.bf16.mxu0 0
  %203 = vmatpush2.bf16.msra.mxu0 0
  %204 = vmatprep.mubr.bf16.mxu0 0
  %205 = vmatmul.mubr.bf16.gmra.mxu0 %v164
  %v206 = vpop.f32.mrf.mxu0
  %v207 = vadd.f32 %v157, %v206
  %v208 = vpop.f32.mrf.mxu0
  %v209 = vadd.f32 %v159, %v208
  %v210 = vpop.f32.mrf.mxu0
  %v211 = vpop.f32.mrf.mxu0
  %212 = vdwg.mxu0
  %213 = vrot.lane.b32.xlu0 %v44, 7
  %v214 = vpop.permute.xlu0 %213
  %215 = vrot.lane.b32.xlu0 %v43, 7
  %v216 = vpop.permute.xlu0 %215
  %vm217 = vcmask 56320
  %v218 = vsel %vm217, %v216, %v214
  %vm220 = vcmask 56320
  %v223 = vsel %vm220, %v214, %v216
  %v225 = vld [vmem:[%s4] sm:$0x22]
  %v227 = vunpack.c.l.b16 %v225
  %v228 = vunpack.c.h.b16 %v225
  %v229 = vpack.c.b16 %v227, %v227
  %v230 = vpack.c.b16 %v228, %v228
  %v232 = vpack.i.b16 %v229, %v229
  %v234 = vlaneseq
  %v235 = vshrl.u32 %v234, 7
  %v236 = vsub.s32 1, %v235
  %v237 = vrot.slane %v232, %v236
  %v239 = vpack.i.b16 %v230, %v230
  %v241 = vlaneseq
  %v242 = vshrl.u32 %v241, 7
  %v243 = vsub.s32 1, %v242
  %v244 = vrot.slane %v239, %v243
  %v245 = vmul.bf16 %v223, %v237
  %v246 = vmul.bf16 %v218, %v244
  %s247 = scalar_lea.vmem %s3, 8
  %v248 = vld [vmem:[%s247] sm:$0xf]
  %v250 = vsel %vm89, %v248, 0
  %v253 = vsel %vm115, %v245, 0
  %v256 = vsel %vm115, %v246, 0
  %258 = vmatprep.subr.bf16.mxu0 0
  %259 = vmatpush1.bf16.msra.mxu0 0
  %260 = vmatprep.subr.bf16.mxu0 0
  %261 = vmatpush1.bf16.msra.mxu0 0
  %262 = vmatprep.subr.bf16.mxu0 0
  %263 = vmatpush1.bf16.msra.mxu0 0
  %264 = vmatprep.subr.bf16.mxu0 0
  %265 = vmatpush1.bf16.msra.mxu0 0
  %266 = vmatprep.subr.bf16.mxu0 0
  %267 = vmatpush1.bf16.msra.mxu0 0
  %268 = vmatprep.subr.bf16.mxu0 0
  %269 = vmatpush1.bf16.msra.mxu0 0
  %270 = vmatprep.subr.bf16.mxu0 0
  %271 = vmatpush1.bf16.msra.mxu0 0
  %272 = vmatprep.subr.bf16.mxu0 %v256
  %273 = vmatpush1.bf16.msra.mxu0 %v253
  %274 = vmatprep.subr.bf16.mxu0 0
  %275 = vmatpush2.bf16.msra.mxu0 0
  %276 = vmatprep.subr.bf16.mxu0 0
  %277 = vmatpush2.bf16.msra.mxu0 0
  %278 = vmatprep.subr.bf16.mxu0 0
  %279 = vmatpush2.bf16.msra.mxu0 0
  %280 = vmatprep.subr.bf16.mxu0 0
  %281 = vmatpush2.bf16.msra.mxu0 0
  %282 = vmatprep.subr.bf16.mxu0 0
  %283 = vmatpush2.bf16.msra.mxu0 0
  %284 = vmatprep.subr.bf16.mxu0 0
  %285 = vmatpush2.bf16.msra.mxu0 0
  %286 = vmatprep.subr.bf16.mxu0 0
  %287 = vmatpush2.bf16.msra.mxu0 0
  %288 = vmatprep.subr.bf16.mxu0 0
  %289 = vmatpush2.bf16.msra.mxu0 0
  %290 = vmatprep.mubr.bf16.mxu0 0
  %291 = vmatmul.mubr.bf16.gmra.mxu0 %v250
  %v292 = vpop.f32.mrf.mxu0
  %v293 = vadd.f32 0.0, %v292
  %v294 = vpop.f32.mrf.mxu0
  %v295 = vadd.f32 0.0, %v294
  %v296 = vpop.f32.mrf.mxu0
  %v297 = vpop.f32.mrf.mxu0
  %298 = vdwg.mxu0
  %v299 = vadd.f32 %v207, %v293
  %v300 = vadd.f32 %v209, %v295
  %301 = vrot.lane.b32.xlu0 %v44, 1
  %v302 = vpop.permute.xlu0 %301
  %303 = vrot.lane.b32.xlu0 %v43, 1
  %v304 = vpop.permute.xlu0 %303
  %vm305 = vcmask 7168
  %v306 = vsel %vm305, %v304, %v302
  %vm308 = vcmask 7168
  %v311 = vsel %vm308, %v302, %v304
  %v313 = vshrl.u32 %v229, 16
  %v314 = vpack.i.b16 %v313, %v313
  %v316 = vlaneseq
  %v317 = vshrl.u32 %v316, 7
  %v318 = vsub.s32 1, %v317
  %v319 = vrot.slane %v314, %v318
  %v320 = vshrl.u32 %v230, 16
  %v321 = vpack.i.b16 %v320, %v320
  %v323 = vlaneseq
  %v324 = vshrl.u32 %v323, 7
  %v325 = vsub.s32 1, %v324
  %v326 = vrot.slane %v321, %v325
  %v327 = vmul.bf16 %v311, %v319
  %v328 = vmul.bf16 %v306, %v326
  %s329 = scalar_lea.vmem %s3, 12
  %v330 = vld [vmem:[%s329] sm:$0xf]
  %v332 = vsel %vm89, %v330, 0
  %v335 = vsel %vm115, %v327, 0
  %v338 = vsel %vm115, %v328, 0
  %340 = vmatprep.subr.bf16.mxu0 0
  %341 = vmatpush1.bf16.msra.mxu0 0
  %342 = vmatprep.subr.bf16.mxu0 0
  %343 = vmatpush1.bf16.msra.mxu0 0
  %344 = vmatprep.subr.bf16.mxu0 0
  %345 = vmatpush1.bf16.msra.mxu0 0
  %346 = vmatprep.subr.bf16.mxu0 0
  %347 = vmatpush1.bf16.msra.mxu0 0
  %348 = vmatprep.subr.bf16.mxu0 0
  %349 = vmatpush1.bf16.msra.mxu0 0
  %350 = vmatprep.subr.bf16.mxu0 0
  %351 = vmatpush1.bf16.msra.mxu0 0
  %352 = vmatprep.subr.bf16.mxu0 0
  %353 = vmatpush1.bf16.msra.mxu0 0
  %354 = vmatprep.subr.bf16.mxu0 %v338
  %355 = vmatpush1.bf16.msra.mxu0 %v335
  %356 = vmatprep.subr.bf16.mxu0 0
  %357 = vmatpush2.bf16.msra.mxu0 0
  %358 = vmatprep.subr.bf16.mxu0 0
  %359 = vmatpush2.bf16.msra.mxu0 0
  %360 = vmatprep.subr.bf16.mxu0 0
  %361 = vmatpush2.bf16.msra.mxu0 0
  %362 = vmatprep.subr.bf16.mxu0 0
  %363 = vmatpush2.bf16.msra.mxu0 0
  %364 = vmatprep.subr.bf16.mxu0 0
  %365 = vmatpush2.bf16.msra.mxu0 0
  %366 = vmatprep.subr.bf16.mxu0 0
  %367 = vmatpush2.bf16.msra.mxu0 0
  %368 = vmatprep.subr.bf16.mxu0 0
  %369 = vmatpush2.bf16.msra.mxu0 0
  %370 = vmatprep.subr.bf16.mxu0 0
  %371 = vmatpush2.bf16.msra.mxu0 0
  %372 = vmatprep.mubr.bf16.mxu0 0
  %373 = vmatmul.mubr.bf16.gmra.mxu0 %v332
  %v374 = vpop.f32.mrf.mxu0
  %v375 = vadd.f32 0.0, %v374
  %v376 = vpop.f32.mrf.mxu0
  %v377 = vadd.f32 0.0, %v376
  %v378 = vpop.f32.mrf.mxu0
  %v379 = vpop.f32.mrf.mxu0
  %380 = vdwg.mxu0
  %v381 = vadd.f32 %v299, %v375
  %v382 = vadd.f32 %v300, %v377
  %v383 = vld [vmem:[%s4] sm:$0x44]
  %v385 = vunpack.c.l.b16 %v383
  %v386 = vunpack.c.h.b16 %v383
  %v387 = vpack.c.b16 %v385, %v385
  %v388 = vpack.c.b16 %v386, %v386
  %v390 = vpack.i.b16 %v387, %v387
  %v392 = vlaneseq
  %v393 = vshrl.u32 %v392, 7
  %v394 = vsub.s32 2, %v393
  %v395 = vrot.slane %v390, %v394
  %v397 = vpack.i.b16 %v388, %v388
  %v399 = vlaneseq
  %v400 = vshrl.u32 %v399, 7
  %v401 = vsub.s32 2, %v400
  %v402 = vrot.slane %v397, %v401
  %v403 = vmul.bf16 %v43, %v395
  %v404 = vmul.bf16 %v44, %v402
  %s405 = scalar_lea.vmem %s3, 16
  %v406 = vld [vmem:[%s405] sm:$0xf]
  %v408 = vsel %vm89, %v406, 0
  %v411 = vsel %vm115, %v403, 0
  %v414 = vsel %vm115, %v404, 0
  %416 = vmatprep.subr.bf16.mxu0 0
  %417 = vmatpush1.bf16.msra.mxu0 0
  %418 = vmatprep.subr.bf16.mxu0 0
  %419 = vmatpush1.bf16.msra.mxu0 0
  %420 = vmatprep.subr.bf16.mxu0 0
  %421 = vmatpush1.bf16.msra.mxu0 0
  %422 = vmatprep.subr.bf16.mxu0 0
  %423 = vmatpush1.bf16.msra.mxu0 0
  %424 = vmatprep.subr.bf16.mxu0 0
  %425 = vmatpush1.bf16.msra.mxu0 0
  %426 = vmatprep.subr.bf16.mxu0 0
  %427 = vmatpush1.bf16.msra.mxu0 0
  %428 = vmatprep.subr.bf16.mxu0 0
  %429 = vmatpush1.bf16.msra.mxu0 0
  %430 = vmatprep.subr.bf16.mxu0 %v414
  %431 = vmatpush1.bf16.msra.mxu0 %v411
  %432 = vmatprep.subr.bf16.mxu0 0
  %433 = vmatpush2.bf16.msra.mxu0 0
  %434 = vmatprep.subr.bf16.mxu0 0
  %435 = vmatpush2.bf16.msra.mxu0 0
  %436 = vmatprep.subr.bf16.mxu0 0
  %437 = vmatpush2.bf16.msra.mxu0 0
  %438 = vmatprep.subr.bf16.mxu0 0
  %439 = vmatpush2.bf16.msra.mxu0 0
  %440 = vmatprep.subr.bf16.mxu0 0
  %441 = vmatpush2.bf16.msra.mxu0 0
  %442 = vmatprep.subr.bf16.mxu0 0
  %443 = vmatpush2.bf16.msra.mxu0 0
  %444 = vmatprep.subr.bf16.mxu0 0
  %445 = vmatpush2.bf16.msra.mxu0 0
  %446 = vmatprep.subr.bf16.mxu0 0
  %447 = vmatpush2.bf16.msra.mxu0 0
  %448 = vmatprep.mubr.bf16.mxu0 0
  %449 = vmatmul.mubr.bf16.gmra.mxu0 %v408
  %v450 = vpop.f32.mrf.mxu0
  %v451 = vadd.f32 0.0, %v450
  %v452 = vpop.f32.mrf.mxu0
  %v453 = vadd.f32 0.0, %v452
  %v454 = vpop.f32.mrf.mxu0
  %v455 = vpop.f32.mrf.mxu0
  %456 = vdwg.mxu0
  %v457 = vadd.f32 %v381, %v451
  %v458 = vadd.f32 %v382, %v453
  %459 = vrot.lane.b32.xlu0 %v43, 127
  %v460 = vpop.permute.xlu0 %459
  %461 = vrot.lane.b32.xlu0 %v44, 127
  %v462 = vpop.permute.xlu0 %461
  %vm463 = vcmask 1039360
  %v464 = vsel %vm463, %v460, %v462
  %vm466 = vcmask 1039360
  %v469 = vsel %vm466, %v462, %v460
  %v471 = vshrl.u32 %v387, 16
  %v472 = vpack.i.b16 %v471, %v471
  %v474 = vlaneseq
  %v475 = vshrl.u32 %v474, 7
  %v476 = vsub.s32 2, %v475
  %v477 = vrot.slane %v472, %v476
  %v478 = vshrl.u32 %v388, 16
  %v479 = vpack.i.b16 %v478, %v478
  %v481 = vlaneseq
  %v482 = vshrl.u32 %v481, 7
  %v483 = vsub.s32 2, %v482
  %v484 = vrot.slane %v479, %v483
  %v485 = vmul.bf16 %v464, %v477
  %v486 = vmul.bf16 %v469, %v484
  %s487 = scalar_lea.vmem %s3, 20
  %v488 = vld [vmem:[%s487] sm:$0xf]
  %v490 = vsel %vm89, %v488, 0
  %v493 = vsel %vm115, %v485, 0
  %v496 = vsel %vm115, %v486, 0
  %498 = vmatprep.subr.bf16.mxu0 0
  %499 = vmatpush1.bf16.msra.mxu0 0
  %500 = vmatprep.subr.bf16.mxu0 0
  %501 = vmatpush1.bf16.msra.mxu0 0
  %502 = vmatprep.subr.bf16.mxu0 0
  %503 = vmatpush1.bf16.msra.mxu0 0
  %504 = vmatprep.subr.bf16.mxu0 0
  %505 = vmatpush1.bf16.msra.mxu0 0
  %506 = vmatprep.subr.bf16.mxu0 0
  %507 = vmatpush1.bf16.msra.mxu0 0
  %508 = vmatprep.subr.bf16.mxu0 0
  %509 = vmatpush1.bf16.msra.mxu0 0
  %510 = vmatprep.subr.bf16.mxu0 0
  %511 = vmatpush1.bf16.msra.mxu0 0
  %512 = vmatprep.subr.bf16.mxu0 %v496
  %513 = vmatpush1.bf16.msra.mxu0 %v493
  %514 = vmatprep.subr.bf16.mxu0 0
  %515 = vmatpush2.bf16.msra.mxu0 0
  %516 = vmatprep.subr.bf16.mxu0 0
  %517 = vmatpush2.bf16.msra.mxu0 0
  %518 = vmatprep.subr.bf16.mxu0 0
  %519 = vmatpush2.bf16.msra.mxu0 0
  %520 = vmatprep.subr.bf16.mxu0 0
  %521 = vmatpush2.bf16.msra.mxu0 0
  %522 = vmatprep.subr.bf16.mxu0 0
  %523 = vmatpush2.bf16.msra.mxu0 0
  %524 = vmatprep.subr.bf16.mxu0 0
  %525 = vmatpush2.bf16.msra.mxu0 0
  %526 = vmatprep.subr.bf16.mxu0 0
  %527 = vmatpush2.bf16.msra.mxu0 0
  %528 = vmatprep.subr.bf16.mxu0 0
  %529 = vmatpush2.bf16.msra.mxu0 0
  %530 = vmatprep.mubr.bf16.mxu0 0
  %531 = vmatmul.mubr.bf16.gmra.mxu0 %v490
  %v532 = vpop.f32.mrf.mxu0
  %v533 = vadd.f32 0.0, %v532
  %v534 = vpop.f32.mrf.mxu0
  %v535 = vadd.f32 0.0, %v534
  %v536 = vpop.f32.mrf.mxu0
  %v537 = vpop.f32.mrf.mxu0
  %538 = vdwg.mxu0
  %v539 = vadd.f32 %v457, %v533
  %v540 = vadd.f32 %v458, %v535
  %541 = vrot.lane.b32.xlu0 %v43, 121
  %v542 = vpop.permute.xlu0 %541
  %543 = vrot.lane.b32.xlu0 %v44, 121
  %v544 = vpop.permute.xlu0 %543
  %vm545 = vcmask 990208
  %v546 = vsel %vm545, %v542, %v544
  %vm548 = vcmask 990208
  %v551 = vsel %vm548, %v544, %v542
  %v553 = vld [vmem:[%s4] sm:$0x88]
  %v555 = vunpack.c.l.b16 %v553
  %v556 = vunpack.c.h.b16 %v553
  %v557 = vpack.c.b16 %v555, %v555
  %v558 = vpack.c.b16 %v556, %v556
  %v560 = vpack.i.b16 %v557, %v557
  %v562 = vlaneseq
  %v563 = vshrl.u32 %v562, 7
  %v564 = vsub.s32 3, %v563
  %v565 = vrot.slane %v560, %v564
  %v567 = vpack.i.b16 %v558, %v558
  %v569 = vlaneseq
  %v570 = vshrl.u32 %v569, 7
  %v571 = vsub.s32 3, %v570
  %v572 = vrot.slane %v567, %v571
  %v573 = vmul.bf16 %v546, %v565
  %v574 = vmul.bf16 %v551, %v572
  %s575 = scalar_lea.vmem %s3, 24
  %v576 = vld [vmem:[%s575] sm:$0xf]
  %v578 = vsel %vm89, %v576, 0
  %v581 = vsel %vm115, %v573, 0
  %v584 = vsel %vm115, %v574, 0
  %586 = vmatprep.subr.bf16.mxu0 0
  %587 = vmatpush1.bf16.msra.mxu0 0
  %588 = vmatprep.subr.bf16.mxu0 0
  %589 = vmatpush1.bf16.msra.mxu0 0
  %590 = vmatprep.subr.bf16.mxu0 0
  %591 = vmatpush1.bf16.msra.mxu0 0
  %592 = vmatprep.subr.bf16.mxu0 0
  %593 = vmatpush1.bf16.msra.mxu0 0
  %594 = vmatprep.subr.bf16.mxu0 0
  %595 = vmatpush1.bf16.msra.mxu0 0
  %596 = vmatprep.subr.bf16.mxu0 0
  %597 = vmatpush1.bf16.msra.mxu0 0
  %598 = vmatprep.subr.bf16.mxu0 0
  %599 = vmatpush1.bf16.msra.mxu0 0
  %600 = vmatprep.subr.bf16.mxu0 %v584
  %601 = vmatpush1.bf16.msra.mxu0 %v581
  %602 = vmatprep.subr.bf16.mxu0 0
  %603 = vmatpush2.bf16.msra.mxu0 0
  %604 = vmatprep.subr.bf16.mxu0 0
  %605 = vmatpush2.bf16.msra.mxu0 0
  %606 = vmatprep.subr.bf16.mxu0 0
  %607 = vmatpush2.bf16.msra.mxu0 0
  %608 = vmatprep.subr.bf16.mxu0 0
  %609 = vmatpush2.bf16.msra.mxu0 0
  %610 = vmatprep.subr.bf16.mxu0 0
  %611 = vmatpush2.bf16.msra.mxu0 0
  %612 = vmatprep.subr.bf16.mxu0 0
  %613 = vmatpush2.bf16.msra.mxu0 0
  %614 = vmatprep.subr.bf16.mxu0 0
  %615 = vmatpush2.bf16.msra.mxu0 0
  %616 = vmatprep.subr.bf16.mxu0 0
  %617 = vmatpush2.bf16.msra.mxu0 0
  %618 = vmatprep.mubr.bf16.mxu0 0
  %619 = vmatmul.mubr.bf16.gmra.mxu0 %v578
  %v620 = vpop.f32.mrf.mxu0
  %v621 = vadd.f32 0.0, %v620
  %v622 = vpop.f32.mrf.mxu0
  %v623 = vadd.f32 0.0, %v622
  %v624 = vpop.f32.mrf.mxu0
  %v625 = vpop.f32.mrf.mxu0
  %626 = vdwg.mxu0
  %v627 = vadd.f32 %v539, %v621
  %v628 = vadd.f32 %v540, %v623
  %629 = vrot.lane.b32.xlu0 %v43, 120
  %v630 = vpop.permute.xlu0 %629
  %631 = vrot.lane.b32.xlu0 %v44, 120
  %v632 = vpop.permute.xlu0 %631
  %vm633 = vcmask 982016
  %v634 = vsel %vm633, %v630, %v632
  %vm636 = vcmask 982016
  %v639 = vsel %vm636, %v632, %v630
  %v641 = vshrl.u32 %v557, 16
  %v642 = vpack.i.b16 %v641, %v641
  %v644 = vlaneseq
  %v645 = vshrl.u32 %v644, 7
  %v646 = vsub.s32 3, %v645
  %v647 = vrot.slane %v642, %v646
  %v648 = vshrl.u32 %v558, 16
  %v649 = vpack.i.b16 %v648, %v648
  %v651 = vlaneseq
  %v652 = vshrl.u32 %v651, 7
  %v653 = vsub.s32 3, %v652
  %v654 = vrot.slane %v649, %v653
  %v655 = vmul.bf16 %v634, %v647
  %v656 = vmul.bf16 %v639, %v654
  %s657 = scalar_lea.vmem %s3, 28
  %v658 = vld [vmem:[%s657] sm:$0xf]
  %v660 = vsel %vm89, %v658, 0
  %v663 = vsel %vm115, %v655, 0
  %v666 = vsel %vm115, %v656, 0
  %668 = vmatprep.subr.bf16.mxu0 0
  %669 = vmatpush1.bf16.msra.mxu0 0
  %670 = vmatprep.subr.bf16.mxu0 0
  %671 = vmatpush1.bf16.msra.mxu0 0
  %672 = vmatprep.subr.bf16.mxu0 0
  %673 = vmatpush1.bf16.msra.mxu0 0
  %674 = vmatprep.subr.bf16.mxu0 0
  %675 = vmatpush1.bf16.msra.mxu0 0
  %676 = vmatprep.subr.bf16.mxu0 0
  %677 = vmatpush1.bf16.msra.mxu0 0
  %678 = vmatprep.subr.bf16.mxu0 0
  %679 = vmatpush1.bf16.msra.mxu0 0
  %680 = vmatprep.subr.bf16.mxu0 0
  %681 = vmatpush1.bf16.msra.mxu0 0
  %682 = vmatprep.subr.bf16.mxu0 %v666
  %683 = vmatpush1.bf16.msra.mxu0 %v663
  %684 = vmatprep.subr.bf16.mxu0 0
  %685 = vmatpush2.bf16.msra.mxu0 0
  %686 = vmatprep.subr.bf16.mxu0 0
  %687 = vmatpush2.bf16.msra.mxu0 0
  %688 = vmatprep.subr.bf16.mxu0 0
  %689 = vmatpush2.bf16.msra.mxu0 0
  %690 = vmatprep.subr.bf16.mxu0 0
  %691 = vmatpush2.bf16.msra.mxu0 0
  %692 = vmatprep.subr.bf16.mxu0 0
  %693 = vmatpush2.bf16.msra.mxu0 0
  %694 = vmatprep.subr.bf16.mxu0 0
  %695 = vmatpush2.bf16.msra.mxu0 0
  %696 = vmatprep.subr.bf16.mxu0 0
  %697 = vmatpush2.bf16.msra.mxu0 0
  %698 = vmatprep.subr.bf16.mxu0 0
  %699 = vmatpush2.bf16.msra.mxu0 0
  %700 = vmatprep.mubr.bf16.mxu0 0
  %701 = vmatmul.mubr.bf16.gmra.mxu0 %v660
  %v702 = vpop.f32.mrf.mxu0
  %v703 = vadd.f32 0.0, %v702
  %v704 = vpop.f32.mrf.mxu0
  %v705 = vadd.f32 0.0, %v704
  %v706 = vpop.f32.mrf.mxu0
  %v707 = vpop.f32.mrf.mxu0
  %708 = vdwg.mxu0
  %v709 = vadd.f32 %v627, %v703
  %v710 = vadd.f32 %v628, %v705
  %711 = vrot.lane.b32.xlu0 %v43, 119
  %v712 = vpop.permute.xlu0 %711
  %713 = vrot.lane.b32.xlu0 %v44, 119
  %v714 = vpop.permute.xlu0 %713
  %vm715 = vcmask 973824
  %v716 = vsel %vm715, %v712, %v714
  %vm718 = vcmask 973824
  %v721 = vsel %vm718, %v714, %v712
  %v723 = vld [vmem:[%s4 + $0x8] sm:$0x11]
  %v725 = vunpack.c.l.b16 %v723
  %v726 = vunpack.c.h.b16 %v723
  %v727 = vpack.c.b16 %v725, %v725
  %v728 = vpack.c.b16 %v726, %v726
  %v730 = vpack.i.b16 %v727, %v727
  %v732 = vlaneseq
  %v733 = vshrl.u32 %v732, 7
  %v734 = vsub.s32 0, %v733
  %v735 = vrot.slane %v730, %v734
  %v737 = vpack.i.b16 %v728, %v728
  %v739 = vlaneseq
  %v740 = vshrl.u32 %v739, 7
  %v741 = vsub.s32 0, %v740
  %v742 = vrot.slane %v737, %v741
  %v743 = vmul.bf16 %v716, %v735
  %v744 = vmul.bf16 %v721, %v742
  %s745 = scalar_lea.vmem %s3, 32
  %v746 = vld [vmem:[%s745] sm:$0xf]
  %v748 = vsel %vm89, %v746, 0
  %v751 = vsel %vm115, %v743, 0
  %v754 = vsel %vm115, %v744, 0
  %756 = vmatprep.subr.bf16.mxu0 0
  %757 = vmatpush1.bf16.msra.mxu0 0
  %758 = vmatprep.subr.bf16.mxu0 0
  %759 = vmatpush1.bf16.msra.mxu0 0
  %760 = vmatprep.subr.bf16.mxu0 0
  %761 = vmatpush1.bf16.msra.mxu0 0
  %762 = vmatprep.subr.bf16.mxu0 0
  %763 = vmatpush1.bf16.msra.mxu0 0
  %764 = vmatprep.subr.bf16.mxu0 0
  %765 = vmatpush1.bf16.msra.mxu0 0
  %766 = vmatprep.subr.bf16.mxu0 0
  %767 = vmatpush1.bf16.msra.mxu0 0
  %768 = vmatprep.subr.bf16.mxu0 0
  %769 = vmatpush1.bf16.msra.mxu0 0
  %770 = vmatprep.subr.bf16.mxu0 %v754
  %771 = vmatpush1.bf16.msra.mxu0 %v751
  %772 = vmatprep.subr.bf16.mxu0 0
  %773 = vmatpush2.bf16.msra.mxu0 0
  %774 = vmatprep.subr.bf16.mxu0 0
  %775 = vmatpush2.bf16.msra.mxu0 0
  %776 = vmatprep.subr.bf16.mxu0 0
  %777 = vmatpush2.bf16.msra.mxu0 0
  %778 = vmatprep.subr.bf16.mxu0 0
  %779 = vmatpush2.bf16.msra.mxu0 0
  %780 = vmatprep.subr.bf16.mxu0 0
  %781 = vmatpush2.bf16.msra.mxu0 0
  %782 = vmatprep.subr.bf16.mxu0 0
  %783 = vmatpush2.bf16.msra.mxu0 0
  %784 = vmatprep.subr.bf16.mxu0 0
  %785 = vmatpush2.bf16.msra.mxu0 0
  %786 = vmatprep.subr.bf16.mxu0 0
  %787 = vmatpush2.bf16.msra.mxu0 0
  %788 = vmatprep.mubr.bf16.mxu0 0
  %789 = vmatmul.mubr.bf16.gmra.mxu0 %v748
  %v790 = vpop.f32.mrf.mxu0
  %v791 = vadd.f32 0.0, %v790
  %v792 = vpop.f32.mrf.mxu0
  %v793 = vadd.f32 0.0, %v792
  %v794 = vpop.f32.mrf.mxu0
  %v795 = vpop.f32.mrf.mxu0
  %796 = vdwg.mxu0
  %v797 = vadd.f32 %v709, %v791
  %v798 = vadd.f32 %v710, %v793
  %799 = vst [vmem:[%s5] sm:$0xff] %v797
  %800 = vst [vmem:[%s5 + $0x8] sm:$0xff] %v798
  %v801 = vadd.f32 %v797, %v798
  %802 = vadd.xlane.f32.xlu0 %v801
  %v803 = vpop.xlane.xlu0 %802
  %804 = vst.msk [vmem:[%s6] sm:$0xff] %vm308, %v803
  %v805 = vmul.f32 %v797, %v797
  %v806 = vmul.f32 %v798, %v798
  %v807 = vadd.f32 %v805, %v806
  %808 = vadd.xlane.f32.xlu0 %v807
  %v809 = vpop.xlane.xlu0 %808
  %vm810 = vcmask 15368
  %811 = vst.msk [vmem:[%s6] sm:$0xff] %vm810, %v809
  // Predicated region
  $region22: #{basic_block_forward.4} parent=0 // pred_check
    _
  $region23: #{basic_block_forward.4} parent=0 // pred_check_branch
    %813 = sbr.rel (0) target = $region25
  $region24: #{basic_block_forward.4} parent=0 // pred_region
    _
  $region25: #{basic_block_forward.4} parent=0 // pred_fallthru
    _
  // Predicated region
  $region26: #{basic_block_forward.4} parent=0 // pred_check
    _
  $region27: #{basic_block_forward.4} parent=0 // pred_check_branch
    %815 = sbr.rel (0) target = $region29
  $region28: #{basic_block_forward.4} parent=0 // pred_region
    _
  $region29: #{basic_block_forward.4} parent=0 // pred_fallthru
    _
  // Predicated region
  $region30: #{basic_block_forward.4} parent=0 // pred_check
    _
  $region31: #{basic_block_forward.4} parent=0 // pred_check_branch
    %817 = sbr.rel (0) target = $region33
  $region32: #{basic_block_forward.4} parent=0 // pred_region
    _
  $region33: #{basic_block_forward.4} parent=0 // pred_fallthru
    _
  // Predicated region
  $region34: #{basic_block_forward.4} parent=0 // pred_check
    _
  $region35: #{basic_block_forward.4} parent=0 // pred_check_branch
    %819 = sbr.rel (0) target = $region37
  $region36: #{basic_block_forward.4} parent=0 // pred_region
    _
  $region37: #{basic_block_forward.4} parent=0 // pred_fallthru
    _

</llo_original>
